<compile_context>
chip_gen: v5e
topology: v5e:2x2
jax: 0.10.0
libtpu: 0.0.40
codegen_flags: <defaults>
</compile_context>

<pallas_src>
import functools

import jax
import jax.numpy as jnp
from jax.experimental import pallas as pl
from jax.experimental.pallas import tpu as pltpu


def _round_up(x, m):
    return ((x + m - 1) // m) * m


def _pick_tk(k_pad, tk_max):
    """Largest multiple of 128 that divides k_pad and is <= tk_max."""
    best = 128
    for mult in range(1, k_pad // 128 + 1):
        cand = mult * 128
        if cand > tk_max:
            break
        if k_pad % cand == 0:
            best = cand
    return best


def _vmem_limit_bytes():
    cap = 64 * 1024 * 1024
    try:
        cap = int(pltpu.get_tpu_info().vmem_capacity_bytes)
    except Exception:
        pass
    # ~3/4 of physical VMEM: ~96 MiB on v5e/v6e (128 MiB), ~48 MiB on v7x (64 MiB).
    return min(cap * 3 // 4, 112 * 1024 * 1024)


def _encoder_kernel(x_ref, wb_ref, ln_ref, wp_ref, bp_ref, o_ref, acc_ref, *, fn):
    # x_ref:   (TM, TK)        bf16 flattened-image tile
    # wb_ref:  (TK, FN_PAD)    bf16 backend weight tile (zero-padded)
    # ln_ref:  (8, FN_PAD)     f32: row0=backend bias, row1=gamma, row2=beta (rest 0)
    # wp_ref:  (FN_PAD, D_PAD) bf16 projection weight (zero-padded rows/cols)
    # bp_ref:  (1, D_PAD)      f32 projection bias (zero-padded)
    # o_ref:   (TM, D_PAD)     f32 output tile
    # acc_ref: (TM, FN_PAD)    f32 accumulator scratch
    k = pl.program_id(1)

    @pl.when(k == 0)
    def _init():
        acc_ref[...] = jnp.zeros_like(acc_ref)

    # Backend matmul partial product: bf16 operands, f32 MXU accumulation.
    acc_ref[...] += jnp.dot(x_ref[...], wb_ref[...],
                            preferred_element_type=jnp.float32)

    @pl.when(k == pl.num_programs(1) - 1)
    def _epilogue():
        bb = ln_ref[0:1, :]
        gamma = ln_ref[1:2, :]
        beta = ln_ref[2:3, :]

        # Bias + ReLU once, on the fully reduced accumulator.
        feat = jnp.maximum(acc_ref[...] + bb, 0.0)

        fn_pad = feat.shape[-1]
        inv_fn = 1.0 / fn
        # LayerNorm over the true `fn` columns. Padded feature columns are
        # exactly zero (wb/bb zero-padded, ReLU keeps them 0), so the sum is
        # already correct; only the centered values need masking before the
        # variance. Biased variance + eps=1e-5 + affine matches nn.LayerNorm.
        mu = jnp.sum(feat, axis=-1, keepdims=True) * inv_fn
        centered = feat - mu
        if fn_pad != fn:
            col = jax.lax.broadcasted_iota(jnp.int32, feat.shape, 1)
            centered = jnp.where(col < fn, centered, 0.0)
        var = jnp.sum(centered * centered, axis=-1, keepdims=True) * inv_fn
        xn = centered * jax.lax.rsqrt(var + 1e-5)
        xn = xn * gamma + beta

        # Projection Linear(fn, d): bf16 MXU feed, f32 accumulate; padded
        # wp rows/cols and bp cols are zero, so padded output cols stay zero.
        out = jnp.dot(xn.astype(jnp.bfloat16), wp_ref[...],
                      preferred_element_type=jnp.float32)
        o_ref[...] = (out + bp_ref[...]).astype(o_ref.dtype)


def prepare_encoder_params(params):
    """Pad / cast parameters once, outside the per-call path."""
    wb, bb, gamma, beta, wp, bp = (params["wb"], params["bb"], params["gamma"],
                                   params["beta"], params["wp"], params["bp"])
    K, fn = wb.shape
    d = wp.shape[1]
    K_pad = _round_up(K, 128)
    fn_pad = _round_up(fn, 128)
    d_pad = _round_up(d, 128)

    wb_p = jnp.pad(wb.astype(jnp.bfloat16), ((0, K_pad - K), (0, fn_pad - fn)))
    # Fused (8, fn_pad) epilogue-parameter block: row0=bb, row1=gamma, row2=beta.
    ln = jnp.zeros((8, fn), jnp.float32)
    ln = ln.at[0, :].set(bb.reshape(fn).astype(jnp.float32))
    ln = ln.at[1, :].set(gamma.reshape(fn).astype(jnp.float32))
    ln = ln.at[2, :].set(beta.reshape(fn).astype(jnp.float32))
    ln_p = jnp.pad(ln, ((0, 0), (0, fn_pad - fn)))
    wp_p = jnp.pad(wp.astype(jnp.bfloat16), ((0, fn_pad - fn), (0, d_pad - d)))
    bp_p = jnp.pad(bp.reshape(1, d).astype(jnp.float32), ((0, 0), (0, d_pad - d)))
    return {"wb_p": wb_p, "ln_p": ln_p, "wp_p": wp_p, "bp_p": bp_p,
            "K": K, "fn": fn, "d": d,
            "K_pad": K_pad, "fn_pad": fn_pad, "d_pad": d_pad}


def image_encoder_forward(tiles, prepared, *, tm=256, tk=2048,
                          single_buffer_consts=True):
    """tiles: (b, n_tiles, C, H, W) float32. Returns (b, n_tiles, d) float32."""
    b, n_tiles, C, H, W = tiles.shape
    N = b * n_tiles
    K = C * H * W
    assert K == prepared["K"], (K, prepared["K"])

    fn, d = prepared["fn"], prepared["d"]
    K_pad, fn_pad, d_pad = prepared["K_pad"], prepared["fn_pad"], prepared["d_pad"]

    # Row tile: multiple of 8; keep >=2 row blocks when possible so the
    # "parallel" axis shards across both v7x TensorCores. (v5e: pass tm=128.)
    N_pad8 = _round_up(N, 8)
    TM = min(tm, N_pad8)
    if N_pad8 >= 16:
        TM = min(TM, _round_up(pl.cdiv(N_pad8, 2), 8))
    N_pad = _round_up(N, TM)

    # Contraction tile: TK divides K_pad (which is only rounded up to 128),
    # so there is no up-to-TK zero-padding work.
    TK = _pick_tk(K_pad, tk)

    # Flatten + bf16-cast BEFORE padding (halves the pad-copy write traffic).
    x = tiles.reshape(N, K).astype(jnp.bfloat16)
    x_p = jnp.pad(x, ((0, N_pad - N), (0, K_pad - K)))

    wb_p, ln_p, wp_p, bp_p = (prepared["wb_p"], prepared["ln_p"],
                              prepared["wp_p"], prepared["bp_p"])

    grid = (N_pad // TM, K_pad // TK)
    num_row_tiles = grid[0]

    cost = pl.CostEstimate(
        flops=2 * N_pad * K_pad * fn_pad + 2 * N_pad * fn_pad * d_pad,
        transcendentals=N_pad,
        bytes_accessed=(x_p.size * 2
                        + wb_p.size * 2 * num_row_tiles  # wb re-streamed per row tile
                        + wp_p.size * 2 + ln_p.size * 4 + bp_p.size * 4
                        + N_pad * d_pad * 4),
    )

    const_kwargs = {}
    if single_buffer_consts and hasattr(pl, "Buffered"):
        # Constant-index epilogue operands: one VMEM buffer is enough.
        const_kwargs = dict(pipeline_mode=pl.Buffered(1))

    grid_spec = pltpu.PrefetchScalarGridSpec(
        num_scalar_prefetch=0,
        grid=grid,
        in_specs=[
            pl.BlockSpec((TM, TK), lambda i, k: (i, k)),                        # x tile
            pl.BlockSpec((TK, fn_pad), lambda i, k: (k, 0)),                    # wb tile
            pl.BlockSpec((8, fn_pad), lambda i, k: (0, 0), **const_kwargs),     # bb/gamma/beta
            pl.BlockSpec((fn_pad, d_pad), lambda i, k: (0, 0), **const_kwargs),  # wp
            pl.BlockSpec((1, d_pad), lambda i, k: (0, 0), **const_kwargs),      # bp
        ],
        out_specs=pl.BlockSpec((TM, d_pad), lambda i, k: (i, 0)),
        scratch_shapes=[pltpu.VMEM((TM, fn_pad), jnp.float32)],
    )

    out = pl.pallas_call(
        functools.partial(_encoder_kernel, fn=fn),
        out_shape=jax.ShapeDtypeStruct((N_pad, d_pad), jnp.float32),
        grid_spec=grid_spec,
        compiler_params=pltpu.CompilerParams(
            dimension_semantics=("parallel", "arbitrary"),
            vmem_limit_bytes=_vmem_limit_bytes(),
        ),
        cost_estimate=cost,
    )(x_p, wb_p, ln_p, wp_p, bp_p)

    return out[:N, :d].reshape(b, n_tiles, d)


def _reference_forward(tiles, params):
    # Pure-JAX reference; quantizes the MXU feeds to bf16 exactly like the
    # kernel (f32 accumulation / epilogue).
    b, n_tiles, C, H, W = tiles.shape
    x = tiles.reshape(b * n_tiles, C * H * W)
    x = x.astype(jnp.bfloat16).astype(jnp.float32)
    wb = params["wb"].astype(jnp.bfloat16).astype(jnp.float32)
    feat = jnp.maximum(x @ wb + params["bb"], 0.0)
    mu = feat.mean(-1, keepdims=True)
    var = ((feat - mu) ** 2).mean(-1, keepdims=True)
    xn = (feat - mu) / jnp.sqrt(var + 1e-5)
    xn = xn * params["gamma"] + params["beta"]
    xn = xn.astype(jnp.bfloat16).astype(jnp.float32)
    wp = params["wp"].astype(jnp.bfloat16).astype(jnp.float32)
    out = xn @ wp + params["bp"]
    return out.reshape(b, n_tiles, -1)


def init_params(key, in_dim, fn, d):
    k1, k2, k3, k4 = jax.random.split(key, 4)
    # deterministic synthetic init (not a checkpoint load)
    wb = jax.random.normal(k1, (in_dim, fn), jnp.float32) / jnp.sqrt(in_dim)
    bb = jax.random.normal(k2, (1, fn), jnp.float32) * 0.01
    gamma = jnp.ones((1, fn), jnp.float32)   # nn.LayerNorm default
    beta = jnp.zeros((1, fn), jnp.float32)
    wp = jax.random.normal(k3, (fn, d), jnp.float32) / jnp.sqrt(fn)
    bp = jax.random.normal(k4, (1, d), jnp.float32) * 0.01
    return {"wb": wb, "bb": bb, "gamma": gamma, "beta": beta,
            "wp": wp, "bp": bp}


if __name__ == "__main__":
    # Small shapes consistent with the module's forward:
    #   tiles: (b, n_tiles, C, H, W), backend features fn, embed_dim d (fn != d)
    b, n_tiles, C, H, W = 2, 2, 3, 16, 16   # K = C*H*W = 768 -> K_pad = 768
    fn, d = 64, 32                           # padded to 128 inside the kernel

    key = jax.random.PRNGKey(0)
    k_x, k_p = jax.random.split(key)
    tiles = jax.random.normal(k_x, (b, n_tiles, C, H, W), jnp.float32)
    params = init_params(k_p, C * H * W, fn, d)
    prepared = prepare_encoder_params(params)   # pad/cast once, not per call

    try:
        out = jax.block_until_ready(image_encoder_forward(tiles, prepared))
    except Exception:
        # Fallback if this JAX version rejects pl.Buffered(1) on the
        # constant-index operands: keep default double-buffering.
        out = jax.block_until_ready(
            image_encoder_forward(tiles, prepared, single_buffer_consts=False))

    ref = _reference_forward(tiles, params)
    assert out.shape == (b, n_tiles, d), out.shape
    assert jnp.allclose(out, ref, atol=1e-2, rtol=1e-2), (
        "mismatch vs reference; max abs diff = %s"
        % float(jnp.max(jnp.abs(out - ref))))

    print("KERNEL_OK")
</pallas_src>

<mosaic_0001>
module attributes {stable_mosaic.version = 11 : i64} {
  func.func @_encoder_kernel(%arg0: i32, %arg1: i32, %arg2: memref<8x768xbf16, #tpu.memory_space<vmem>>, %arg3: memref<768x128xbf16, #tpu.memory_space<vmem>>, %arg4: memref<8x128xf32, #tpu.memory_space<vmem>>, %arg5: memref<128x128xbf16, #tpu.memory_space<vmem>>, %arg6: memref<1x128xf32, #tpu.memory_space<vmem>>, %arg7: memref<8x128xf32, #tpu.memory_space<vmem>>, %arg8: memref<8x128xf32, #tpu.memory_space<vmem>>) attributes {dimension_semantics = [#tpu.dimension_semantics<parallel>, #tpu.dimension_semantics<arbitrary>], iteration_bounds = array<i64: 1, 1>, scalar_prefetch = 0 : i64, scratch_operands = 1 : i64, tpu.core_type = #tpu.core_type<tc>, window_params = [{transform_indices = @transform_0, window_bounds = array<i64: 8, 768>}, {transform_indices = @transform_1, window_bounds = array<i64: 768, 128>}, {pipeline_mode = #tpu.pipeline_mode<synchronous>, transform_indices = @transform_2, window_bounds = array<i64: 8, 128>}, {pipeline_mode = #tpu.pipeline_mode<synchronous>, transform_indices = @transform_3, window_bounds = array<i64: 128, 128>}, {pipeline_mode = #tpu.pipeline_mode<synchronous>, transform_indices = @transform_4, window_bounds = array<i64: 1, 128>}, {transform_indices = @transform_5, window_bounds = array<i64: 8, 128>}]} {
    %c0_i32 = arith.constant 0 : i32
    %0 = arith.cmpi eq, %arg1, %c0_i32 : i32
    %1 = arith.extui %0 : i1 to i32
    %c0_i32_0 = arith.constant 0 : i32
    %2 = arith.cmpi ne, %1, %c0_i32_0 : i32
    scf.if %2 {
      %cst_10 = arith.constant 0.000000e+00 : f32
      %12 = vector.broadcast %cst_10 : f32 to vector<8x128xf32>
      %c0_11 = arith.constant 0 : index
      %c0_12 = arith.constant 0 : index
      %13 = vector.load %arg8[%c0_11, %c0_12] : memref<8x128xf32, #tpu.memory_space<vmem>>, vector<8x128xf32>
      tpu.vector_store %arg8[%c0_11, %c0_12], %12 {strides = array<i32>} : memref<8x128xf32, #tpu.memory_space<vmem>>, vector<8x128xf32>,
    } else {
    }
    %c0 = arith.constant 0 : index
    %c0_1 = arith.constant 0 : index
    %3 = vector.load %arg8[%c0, %c0_1] : memref<8x128xf32, #tpu.memory_space<vmem>>, vector<8x128xf32>
    %c0_2 = arith.constant 0 : index
    %c0_3 = arith.constant 0 : index
    %4 = vector.load %arg2[%c0_2, %c0_3] : memref<8x768xbf16, #tpu.memory_space<vmem>>, vector<8x768xbf16>
    %c0_4 = arith.constant 0 : index
    %c0_5 = arith.constant 0 : index
    %5 = vector.load %arg3[%c0_4, %c0_5] : memref<768x128xbf16, #tpu.memory_space<vmem>>, vector<768x128xbf16>
    %cst = arith.constant dense<0.000000e+00> : vector<8x128xf32>
    %6 = tpu.matmul %4, %5, %cst {dimension_numbers = #tpu.dot_dimension_numbers<[1], [0], [0], [1], [0, 0, 1, 1], [], []>} : vector<8x768xbf16>, vector<768x128xbf16>, vector<8x128xf32> -> vector<8x128xf32>
    %7 = arith.addf %3, %6 : vector<8x128xf32>
    %c0_6 = arith.constant 0 : index
    %c0_7 = arith.constant 0 : index
    %8 = vector.load %arg8[%c0_6, %c0_7] : memref<8x128xf32, #tpu.memory_space<vmem>>, vector<8x128xf32>
    tpu.vector_store %arg8[%c0_6, %c0_7], %7 {strides = array<i32>} : memref<8x128xf32, #tpu.memory_space<vmem>>, vector<8x128xf32>,
    %c0_i32_8 = arith.constant 0 : i32
    %9 = arith.cmpi eq, %arg1, %c0_i32_8 : i32
    %10 = arith.extui %9 : i1 to i32
    %c0_i32_9 = arith.constant 0 : i32
    %11 = arith.cmpi ne, %10, %c0_i32_9 : i32
    scf.if %11 {
      %c0_10 = arith.constant 0 : index
      %c0_11 = arith.constant 0 : index
      %12 = vector.load %arg4[%c0_10, %c0_11] : memref<8x128xf32, #tpu.memory_space<vmem>>, vector<1x128xf32>
      %c1 = arith.constant 1 : index
      %c0_12 = arith.constant 0 : index
      %13 = vector.load %arg4[%c1, %c0_12] : memref<8x128xf32, #tpu.memory_space<vmem>>, vector<1x128xf32>
      %c2 = arith.constant 2 : index
      %c0_13 = arith.constant 0 : index
      %14 = vector.load %arg4[%c2, %c0_13] : memref<8x128xf32, #tpu.memory_space<vmem>>, vector<1x128xf32>
      %c0_14 = arith.constant 0 : index
      %c0_15 = arith.constant 0 : index
      %15 = vector.load %arg8[%c0_14, %c0_15] : memref<8x128xf32, #tpu.memory_space<vmem>>, vector<8x128xf32>
      %16 = vector.broadcast %12 : vector<1x128xf32> to vector<8x128xf32>
      %17 = arith.addf %15, %16 : vector<8x128xf32>
      %cst_16 = arith.constant 0.000000e+00 : f32
      %18 = vector.broadcast %cst_16 : f32 to vector<8x128xf32>
      %19 = arith.maximumf %17, %18 : vector<8x128xf32>
      %cst_17 = arith.constant dense<0.000000e+00> : vector<8xf32>
      %20 = vector.multi_reduction <add>, %19, %cst_17 [1] : vector<8x128xf32> to vector<8xf32>
      %21 = vector.shape_cast %20 : vector<8xf32> to vector<8x1xf32>
      %cst_18 = arith.constant 1.562500e-02 : f32
      %22 = vector.broadcast %cst_18 : f32 to vector<8x1xf32>
      %23 = arith.mulf %21, %22 : vector<8x1xf32>
      %24 = vector.broadcast %23 : vector<8x1xf32> to vector<8x128xf32>
      %25 = arith.subf %19, %24 : vector<8x128xf32>
      %26 = tpu.iota {dimensions = array<i32: 1>} : vector<8x128xi32>
      %c64_i32 = arith.constant 64 : i32
      %27 = vector.broadcast %c64_i32 : i32 to vector<8x128xi32>
      %28 = arith.cmpi slt, %26, %27 : vector<8x128xi32>
      %cst_19 = arith.constant 0.000000e+00 : f32
      %29 = vector.broadcast %cst_19 : f32 to vector<8x128xf32>
      %30 = arith.select %28, %25, %29 : vector<8x128xi1>, vector<8x128xf32>
      %31 = arith.mulf %30, %30 : vector<8x128xf32>
      %cst_20 = arith.constant dense<0.000000e+00> : vector<8xf32>
      %32 = vector.multi_reduction <add>, %31, %cst_20 [1] : vector<8x128xf32> to vector<8xf32>
      %33 = vector.shape_cast %32 : vector<8xf32> to vector<8x1xf32>
      %cst_21 = arith.constant 1.562500e-02 : f32
      %34 = vector.broadcast %cst_21 : f32 to vector<8x1xf32>
      %35 = arith.mulf %33, %34 : vector<8x1xf32>
      %cst_22 = arith.constant 9.99999974E-6 : f32
      %36 = vector.broadcast %cst_22 : f32 to vector<8x1xf32>
      %37 = arith.addf %35, %36 : vector<8x1xf32>
      %38 = math.rsqrt %37 : vector<8x1xf32>
      %39 = vector.broadcast %38 : vector<8x1xf32> to vector<8x128xf32>
      %40 = arith.mulf %30, %39 : vector<8x128xf32>
      %41 = vector.broadcast %13 : vector<1x128xf32> to vector<8x128xf32>
      %42 = arith.mulf %40, %41 : vector<8x128xf32>
      %43 = vector.broadcast %14 : vector<1x128xf32> to vector<8x128xf32>
      %44 = arith.addf %42, %43 : vector<8x128xf32>
      %45 = arith.truncf %44 : vector<8x128xf32> to vector<8x128xbf16>
      %c0_23 = arith.constant 0 : index
      %c0_24 = arith.constant 0 : index
      %46 = vector.load %arg5[%c0_23, %c0_24] : memref<128x128xbf16, #tpu.memory_space<vmem>>, vector<128x128xbf16>
      %cst_25 = arith.constant dense<0.000000e+00> : vector<8x128xf32>
      %47 = tpu.matmul %45, %46, %cst_25 {dimension_numbers = #tpu.dot_dimension_numbers<[1], [0], [0], [1], [0, 0, 1, 1], [], []>} : vector<8x128xbf16>, vector<128x128xbf16>, vector<8x128xf32> -> vector<8x128xf32>
      %c0_26 = arith.constant 0 : index
      %c0_27 = arith.constant 0 : index
      %48 = vector.load %arg6[%c0_26, %c0_27] : memref<1x128xf32, #tpu.memory_space<vmem>>, vector<1x128xf32>
      %49 = vector.broadcast %48 : vector<1x128xf32> to vector<8x128xf32>
      %50 = arith.addf %47, %49 : vector<8x128xf32>
      %c0_28 = arith.constant 0 : index
      %c0_29 = arith.constant 0 : index
      %51 = vector.load %arg7[%c0_28, %c0_29] : memref<8x128xf32, #tpu.memory_space<vmem>>, vector<8x128xf32>
      tpu.vector_store %arg7[%c0_28, %c0_29], %50 {strides = array<i32>} : memref<8x128xf32, #tpu.memory_space<vmem>>, vector<8x128xf32>,
    } else {
    }
    return
  }
  func.func @transform_0(%arg0: i32, %arg1: i32) -> (i32, i32) {
    %c0_i32 = arith.constant 0 : i32
    return %arg0, %arg1 : i32, i32
  }
  func.func @transform_1(%arg0: i32, %arg1: i32) -> (i32, i32) {
    %c0_i32 = arith.constant 0 : i32
    %c0_i32_0 = arith.constant 0 : i32
    return %arg1, %c0_i32 : i32, i32
  }
  func.func @transform_2(%arg0: i32, %arg1: i32) -> (i32, i32) {
    %c0_i32 = arith.constant 0 : i32
    %c0_i32_0 = arith.constant 0 : i32
    %c0_i32_1 = arith.constant 0 : i32
    return %c0_i32, %c0_i32_0 : i32, i32
  }
  func.func @transform_3(%arg0: i32, %arg1: i32) -> (i32, i32) {
    %c0_i32 = arith.constant 0 : i32
    %c0_i32_0 = arith.constant 0 : i32
    %c0_i32_1 = arith.constant 0 : i32
    return %c0_i32, %c0_i32_0 : i32, i32
  }
  func.func @transform_4(%arg0: i32, %arg1: i32) -> (i32, i32) {
    %c0_i32 = arith.constant 0 : i32
    %c0_i32_0 = arith.constant 0 : i32
    %c0_i32_1 = arith.constant 0 : i32
    return %c0_i32, %c0_i32_0 : i32, i32
  }
  func.func @transform_5(%arg0: i32, %arg1: i32) -> (i32, i32) {
    %c0_i32 = arith.constant 0 : i32
    %c0_i32_0 = arith.constant 0 : i32
    return %arg0, %c0_i32 : i32, i32
  }
}

module attributes {stable_mosaic.version = 11 : i64} {
  func.func @_encoder_kernel(%arg0: i32, %arg1: i32, %arg2: memref<8x768xbf16, #tpu.memory_space<vmem>>, %arg3: memref<768x128xbf16, #tpu.memory_space<vmem>>, %arg4: memref<8x128xf32, #tpu.memory_space<vmem>>, %arg5: memref<128x128xbf16, #tpu.memory_space<vmem>>, %arg6: memref<1x128xf32, #tpu.memory_space<vmem>>, %arg7: memref<8x128xf32, #tpu.memory_space<vmem>>, %arg8: memref<8x128xf32, #tpu.memory_space<vmem>>) attributes {dimension_semantics = [#tpu.dimension_semantics<parallel>, #tpu.dimension_semantics<arbitrary>], iteration_bounds = array<i64: 1, 1>, scalar_prefetch = 0 : i64, scratch_operands = 1 : i64, tpu.core_type = #tpu.core_type<tc>, window_params = [{transform_indices = @transform_0, window_bounds = array<i64: 8, 768>}, {transform_indices = @transform_1, window_bounds = array<i64: 768, 128>}, {pipeline_mode = #tpu.pipeline_mode<synchronous>, transform_indices = @transform_2, window_bounds = array<i64: 8, 128>}, {pipeline_mode = #tpu.pipeline_mode<synchronous>, transform_indices = @transform_3, window_bounds = array<i64: 128, 128>}, {pipeline_mode = #tpu.pipeline_mode<synchronous>, transform_indices = @transform_4, window_bounds = array<i64: 1, 128>}, {transform_indices = @transform_5, window_bounds = array<i64: 8, 128>}]} {
    %c0_i32 = arith.constant 0 : i32
    %0 = arith.cmpi eq, %arg1, %c0_i32 : i32
    %1 = arith.extui %0 : i1 to i32
    %c0_i32_0 = arith.constant 0 : i32
    %2 = arith.cmpi ne, %1, %c0_i32_0 : i32
    scf.if %2 {
      %cst_10 = arith.constant 0.000000e+00 : f32
      %12 = vector.broadcast %cst_10 : f32 to vector<8x128xf32>
      %c0_11 = arith.constant 0 : index
      %c0_12 = arith.constant 0 : index
      %13 = vector.load %arg8[%c0_11, %c0_12] : memref<8x128xf32, #tpu.memory_space<vmem>>, vector<8x128xf32>
      tpu.vector_store %arg8[%c0_11, %c0_12], %12 {strides = array<i32>} : memref<8x128xf32, #tpu.memory_space<vmem>>, vector<8x128xf32>,
    } else {
    }
    %c0 = arith.constant 0 : index
    %c0_1 = arith.constant 0 : index
    %3 = vector.load %arg8[%c0, %c0_1] : memref<8x128xf32, #tpu.memory_space<vmem>>, vector<8x128xf32>
    %c0_2 = arith.constant 0 : index
    %c0_3 = arith.constant 0 : index
    %4 = vector.load %arg2[%c0_2, %c0_3] : memref<8x768xbf16, #tpu.memory_space<vmem>>, vector<8x768xbf16>
    %c0_4 = arith.constant 0 : index
    %c0_5 = arith.constant 0 : index
    %5 = vector.load %arg3[%c0_4, %c0_5] : memref<768x128xbf16, #tpu.memory_space<vmem>>, vector<768x128xbf16>
    %cst = arith.constant dense<0.000000e+00> : vector<8x128xf32>
    %6 = tpu.matmul %4, %5, %cst {dimension_numbers = #tpu.dot_dimension_numbers<[1], [0], [0], [1], [0, 0, 1, 1], [], []>} : vector<8x768xbf16>, vector<768x128xbf16>, vector<8x128xf32> -> vector<8x128xf32>
    %7 = arith.addf %3, %6 : vector<8x128xf32>
    %c0_6 = arith.constant 0 : index
    %c0_7 = arith.constant 0 : index
    %8 = vector.load %arg8[%c0_6, %c0_7] : memref<8x128xf32, #tpu.memory_space<vmem>>, vector<8x128xf32>
    tpu.vector_store %arg8[%c0_6, %c0_7], %7 {strides = array<i32>} : memref<8x128xf32, #tpu.memory_space<vmem>>, vector<8x128xf32>,
    %c0_i32_8 = arith.constant 0 : i32
    %9 = arith.cmpi eq, %arg1, %c0_i32_8 : i32
    %10 = arith.extui %9 : i1 to i32
    %c0_i32_9 = arith.constant 0 : i32
    %11 = arith.cmpi ne, %10, %c0_i32_9 : i32
    scf.if %11 {
      %c0_10 = arith.constant 0 : index
      %c0_11 = arith.constant 0 : index
      %12 = vector.load %arg4[%c0_10, %c0_11] : memref<8x128xf32, #tpu.memory_space<vmem>>, vector<1x128xf32>
      %c1 = arith.constant 1 : index
      %c0_12 = arith.constant 0 : index
      %13 = vector.load %arg4[%c1, %c0_12] : memref<8x128xf32, #tpu.memory_space<vmem>>, vector<1x128xf32>
      %c2 = arith.constant 2 : index
      %c0_13 = arith.constant 0 : index
      %14 = vector.load %arg4[%c2, %c0_13] : memref<8x128xf32, #tpu.memory_space<vmem>>, vector<1x128xf32>
      %c0_14 = arith.constant 0 : index
      %c0_15 = arith.constant 0 : index
      %15 = vector.load %arg8[%c0_14, %c0_15] : memref<8x128xf32, #tpu.memory_space<vmem>>, vector<8x128xf32>
      %16 = vector.broadcast %12 : vector<1x128xf32> to vector<8x128xf32>
      %17 = arith.addf %15, %16 : vector<8x128xf32>
      %cst_16 = arith.constant 0.000000e+00 : f32
      %18 = vector.broadcast %cst_16 : f32 to vector<8x128xf32>
      %19 = arith.maximumf %17, %18 : vector<8x128xf32>
      %cst_17 = arith.constant dense<0.000000e+00> : vector<8xf32>
      %20 = vector.multi_reduction <add>, %19, %cst_17 [1] : vector<8x128xf32> to vector<8xf32>
      %21 = vector.shape_cast %20 : vector<8xf32> to vector<8x1xf32>
      %cst_18 = arith.constant 1.562500e-02 : f32
      %22 = vector.broadcast %cst_18 : f32 to vector<8x1xf32>
      %23 = arith.mulf %21, %22 : vector<8x1xf32>
      %24 = vector.broadcast %23 : vector<8x1xf32> to vector<8x128xf32>
      %25 = arith.subf %19, %24 : vector<8x128xf32>
      %26 = tpu.iota {dimensions = array<i32: 1>} : vector<8x128xi32>
      %c64_i32 = arith.constant 64 : i32
      %27 = vector.broadcast %c64_i32 : i32 to vector<8x128xi32>
      %28 = arith.cmpi slt, %26, %27 : vector<8x128xi32>
      %cst_19 = arith.constant 0.000000e+00 : f32
      %29 = vector.broadcast %cst_19 : f32 to vector<8x128xf32>
      %30 = arith.select %28, %25, %29 : vector<8x128xi1>, vector<8x128xf32>
      %31 = arith.mulf %30, %30 : vector<8x128xf32>
      %cst_20 = arith.constant dense<0.000000e+00> : vector<8xf32>
      %32 = vector.multi_reduction <add>, %31, %cst_20 [1] : vector<8x128xf32> to vector<8xf32>
      %33 = vector.shape_cast %32 : vector<8xf32> to vector<8x1xf32>
      %cst_21 = arith.constant 1.562500e-02 : f32
      %34 = vector.broadcast %cst_21 : f32 to vector<8x1xf32>
      %35 = arith.mulf %33, %34 : vector<8x1xf32>
      %cst_22 = arith.constant 9.99999974E-6 : f32
      %36 = vector.broadcast %cst_22 : f32 to vector<8x1xf32>
      %37 = arith.addf %35, %36 : vector<8x1xf32>
      %38 = math.rsqrt %37 : vector<8x1xf32>
      %39 = vector.broadcast %38 : vector<8x1xf32> to vector<8x128xf32>
      %40 = arith.mulf %30, %39 : vector<8x128xf32>
      %41 = vector.broadcast %13 : vector<1x128xf32> to vector<8x128xf32>
      %42 = arith.mulf %40, %41 : vector<8x128xf32>
      %43 = vector.broadcast %14 : vector<1x128xf32> to vector<8x128xf32>
      %44 = arith.addf %42, %43 : vector<8x128xf32>
      %45 = arith.truncf %44 : vector<8x128xf32> to vector<8x128xbf16>
      %c0_23 = arith.constant 0 : index
      %c0_24 = arith.constant 0 : index
      %46 = vector.load %arg5[%c0_23, %c0_24] : memref<128x128xbf16, #tpu.memory_space<vmem>>, vector<128x128xbf16>
      %cst_25 = arith.constant dense<0.000000e+00> : vector<8x128xf32>
      %47 = tpu.matmul %45, %46, %cst_25 {dimension_numbers = #tpu.dot_dimension_numbers<[1], [0], [0], [1], [0, 0, 1, 1], [], []>} : vector<8x128xbf16>, vector<128x128xbf16>, vector<8x128xf32> -> vector<8x128xf32>
      %c0_26 = arith.constant 0 : index
      %c0_27 = arith.constant 0 : index
      %48 = vector.load %arg6[%c0_26, %c0_27] : memref<1x128xf32, #tpu.memory_space<vmem>>, vector<1x128xf32>
      %49 = vector.broadcast %48 : vector<1x128xf32> to vector<8x128xf32>
      %50 = arith.addf %47, %49 : vector<8x128xf32>
      %c0_28 = arith.constant 0 : index
      %c0_29 = arith.constant 0 : index
      %51 = vector.load %arg7[%c0_28, %c0_29] : memref<8x128xf32, #tpu.memory_space<vmem>>, vector<8x128xf32>
      tpu.vector_store %arg7[%c0_28, %c0_29], %50 {strides = array<i32>} : memref<8x128xf32, #tpu.memory_space<vmem>>, vector<8x128xf32>,
    } else {
    }
    return
  }
  func.func @transform_0(%arg0: i32, %arg1: i32) -> (i32, i32) {
    %c0_i32 = arith.constant 0 : i32
    return %arg0, %arg1 : i32, i32
  }
  func.func @transform_1(%arg0: i32, %arg1: i32) -> (i32, i32) {
    %c0_i32 = arith.constant 0 : i32
    %c0_i32_0 = arith.constant 0 : i32
    return %arg1, %c0_i32 : i32, i32
  }
  func.func @transform_2(%arg0: i32, %arg1: i32) -> (i32, i32) {
    %c0_i32 = arith.constant 0 : i32
    %c0_i32_0 = arith.constant 0 : i32
    %c0_i32_1 = arith.constant 0 : i32
    return %c0_i32, %c0_i32_0 : i32, i32
  }
  func.func @transform_3(%arg0: i32, %arg1: i32) -> (i32, i32) {
    %c0_i32 = arith.constant 0 : i32
    %c0_i32_0 = arith.constant 0 : i32
    %c0_i32_1 = arith.constant 0 : i32
    return %c0_i32, %c0_i32_0 : i32, i32
  }
  func.func @transform_4(%arg0: i32, %arg1: i32) -> (i32, i32) {
    %c0_i32 = arith.constant 0 : i32
    %c0_i32_0 = arith.constant 0 : i32
    %c0_i32_1 = arith.constant 0 : i32
    return %c0_i32, %c0_i32_0 : i32, i32
  }
  func.func @transform_5(%arg0: i32, %arg1: i32) -> (i32, i32) {
    %c0_i32 = arith.constant 0 : i32
    %c0_i32_0 = arith.constant 0 : i32
    return %arg0, %c0_i32 : i32, i32
  }
}

</mosaic_0001>

<llo_original>
// kernel: tpu_custom_call.1
$region0: #{tpu_custom_call.1}
  #allocation0 [shape = 'u32[]', space=smem, size = 0x4, offset = 0x4, fixed_abs, tag = 'smem constant byte address 0x4 - core index']
  #allocation1 [shape = 'u32[72,128]{1,0:T(1,128)}', space=vmem, size = 0x9000, scoped, tag = 'internal scratch']
  #allocation2 [shape = 'f32[8,128]{1,0:T(8,128)}', space=vmem, size = 0x1000, scoped, tag = 'scratch operand']
  %s0 = inlined_call_operand.hbm [shape: bf16[8,768], index: 0, kind: input, shape index: {}]
  %s1 = inlined_call_operand.hbm [shape: bf16[768,128], index: 1, kind: input, shape index: {}]
  %s2 = inlined_call_operand.hbm [shape: f32[8,128], index: 2, kind: input, shape index: {}]
  %s3 = inlined_call_operand.hbm [shape: bf16[128,128], index: 3, kind: input, shape index: {}]
  %s4 = inlined_call_operand.vmem [shape: f32[1,128], index: 4, kind: input, shape index: {}]
  %s5 = inlined_call_operand.hbm [shape: f32[8,128], index: 5, kind: output, shape index: {}]
  %s6 = sld [smem:[#allocation0]]
  $region54: #{tpu_custom_call.1} parent=0
    _
  %s8 = ssub.s32 1, %s6
  %s9 = scalar_select 0, %s8, %s6
  $region1: #{tpu_custom_call.1} parent=0
    #allocation3 [shape = 'u8[12288]{0}', space=vmem, size = 0x3000, scoped, tag = 'input window, operand 0, single buffered']
    #allocation4 [shape = 's32[1]{0}', space=sflag, size = 0x4, scoped, tag = 'scoped memory for tpu_custom_call.1']
    #allocation5 [shape = 's32[1]{0}', space=sflag, size = 0x4, scoped, tag = 'scoped memory for tpu_custom_call.1']
    #allocation6 [shape = 'u8[196608]{0}', space=vmem, size = 0x30000, scoped, tag = 'input window, operand 1, single buffered']
    #allocation7 [shape = 's32[1]{0}', space=sflag, size = 0x4, scoped, tag = 'scoped memory for tpu_custom_call.1']
    #allocation8 [shape = 'u8[4096]{0}', space=vmem, size = 0x1000, scoped, tag = 'input window, operand 2, single buffered']
    #allocation9 [shape = 'u8[32768]{0}', space=vmem, size = 0x8000, scoped, tag = 'input window, operand 3, single buffered']
    #allocation10 [shape = 's32[1]{0}', space=sflag, size = 0x4, scoped, tag = 'scoped memory for tpu_custom_call.1']
    #allocation11 [shape = 'u8[4096]{0}', space=vmem, size = 0x1000, scoped, tag = 'output window, operand 0, single buffered']
    %10 = vsyncpa [#allocation4], 0
    %11 = vsyncpa [#allocation7], 0
    %12 = vsyncpa [#allocation10], 0
    %13 = vsyncpa [#allocation5], 0
    // Predicated region
    $region2: #{tpu_custom_call.1} parent=1 // pred_check
      _
    $region3: #{tpu_custom_call.1} parent=1 // pred_check_branch
      %15 = sbr.rel (0) target = $region5
    $region4: #{tpu_custom_call.1} parent=1 // pred_region
      %17 = vsyncadd [#allocation4], 0
      %s19 = sshll.u32 %s0, 4
      %s20 = int_to_ptr.hbm [resolvable:$true] %s19
      %s21 = sshll.u32 [#allocation3], 4
      %s22 = int_to_ptr.vmem [resolvable:$true] %s21
      %24 = dma.hbm_to_vmem [thread:$0]  %s20, 384, %s22, [#allocation4]
    $region5: #{tpu_custom_call.1} parent=1 // pred_fallthru
      _
    // Predicated region
    $region6: #{tpu_custom_call.1} parent=1 // pred_check
      _
    $region7: #{tpu_custom_call.1} parent=1 // pred_check_branch
      %26 = sbr.rel (0) target = $region9
    $region8: #{tpu_custom_call.1} parent=1 // pred_region
      %28 = vsyncadd [#allocation7], 0
      %s29 = sshll.u32 %s1, 4
      %s30 = int_to_ptr.hbm [resolvable:$true] %s29
      %s31 = sshll.u32 [#allocation6], 4
      %s32 = int_to_ptr.vmem [resolvable:$true] %s31
      %37 = dma.hbm_to_vmem [thread:$0]  %s30, 6144, %s32, [#allocation7], 64, 64, 4
    $region9: #{tpu_custom_call.1} parent=1 // pred_fallthru
      _
    // Predicated region
    $region10: #{tpu_custom_call.1} parent=1 // pred_check
      _
    $region11: #{tpu_custom_call.1} parent=1 // pred_check_branch
      %39 = sbr.rel (0) target = $region13
    $region12: #{tpu_custom_call.1} parent=1 // pred_region
      %41 = vsyncadd [#allocation7], 0
      %s43 = sshll.u32 %s2, 4
      %s44 = int_to_ptr.hbm [resolvable:$true] %s43
      %s45 = sshll.u32 [#allocation8], 4
      %s46 = int_to_ptr.vmem [resolvable:$true] %s45
      %48 = dma.hbm_to_vmem [thread:$0]  %s44, 128, %s46, [#allocation7]
    $region13: #{tpu_custom_call.1} parent=1 // pred_fallthru
      _
    // Predicated region
    $region14: #{tpu_custom_call.1} parent=1 // pred_check
      _
    $region15: #{tpu_custom_call.1} parent=1 // pred_check_branch
      %50 = sbr.rel (0) target = $region17
    $region16: #{tpu_custom_call.1} parent=1 // pred_region
      %52 = vsyncadd [#allocation10], 0
      %s53 = sshll.u32 %s3, 4
      %s54 = int_to_ptr.hbm [resolvable:$true] %s53
      %s55 = sshll.u32 [#allocation9], 4
      %s56 = int_to_ptr.vmem [resolvable:$true] %s55
      %61 = dma.hbm_to_vmem [thread:$0]  %s54, 1024, %s56, [#allocation10], 64, 64, 4
    $region17: #{tpu_custom_call.1} parent=1 // pred_fallthru
      _
    // Predicated region
    $region18: #{tpu_custom_call.1} parent=1 // pred_check
      _
    $region19: #{tpu_custom_call.1} parent=1 // pred_check_branch
      %63 = sbr.rel (0) target = $region21
    $region20: #{tpu_custom_call.1} parent=1 // pred_region
      _
    $region21: #{tpu_custom_call.1} parent=1 // pred_fallthru
      _
    // Predicated region
    $region22: #{tpu_custom_call.1} parent=1 // pred_check
      _
    $region23: #{tpu_custom_call.1} parent=1 // pred_check_branch
      %65 = sbr.rel (0) target = $region25
    $region24: #{tpu_custom_call.1} parent=1 // pred_region
      %67 = dma.done [#allocation4], 384
    $region25: #{tpu_custom_call.1} parent=1 // pred_fallthru
      _
    // Predicated region
    $region26: #{tpu_custom_call.1} parent=1 // pred_check
      _
    $region27: #{tpu_custom_call.1} parent=1 // pred_check_branch
      %69 = sbr.rel (0) target = $region29
    $region28: #{tpu_custom_call.1} parent=1 // pred_region
      %71 = dma.done [#allocation7], 6144
    $region29: #{tpu_custom_call.1} parent=1 // pred_fallthru
      _
    // Predicated region
    $region30: #{tpu_custom_call.1} parent=1 // pred_check
      _
    $region31: #{tpu_custom_call.1} parent=1 // pred_check_branch
      %73 = sbr.rel (0) target = $region33
    $region32: #{tpu_custom_call.1} parent=1 // pred_region
      %75 = dma.done [#allocation7], 128
    $region33: #{tpu_custom_call.1} parent=1 // pred_fallthru
      _
    // Predicated region
    $region34: #{tpu_custom_call.1} parent=1 // pred_check
      _
    $region35: #{tpu_custom_call.1} parent=1 // pred_check_branch
      %77 = sbr.rel (0) target = $region37
    $region36: #{tpu_custom_call.1} parent=1 // pred_region
      %79 = dma.done [#allocation10], 1024
    $region37: #{tpu_custom_call.1} parent=1 // pred_fallthru
      _
    %p80 = scmp.eq.s32.totalorder 0, 0
    // Predicated region
    $region38: #{tpu_custom_call.1} parent=1 // pred_check
      %p81 = pneg %p80
    $region39: #{tpu_custom_call.1} parent=1 // pred_check_branch
      %83 = sbr.rel (%p81) target = $region41
    $region40: #{tpu_custom_call.1} parent=1 // pred_region
      %84 = vst [vmem:[#allocation2] sm:$0xff] 0.0
    $region41: #{tpu_custom_call.1} parent=1 // pred_fallthru
      _
    %v85 = vld [vmem:[#allocation2] sm:$0xff]
    %v86 = vld [vmem:[#allocation3] sm:$0xff]
    %v87 = vld [vmem:[#allocation3 + $0x8] sm:$0xff]
    %v88 = vld [vmem:[#allocation3 + $0x10] sm:$0xff]
    %v89 = vld [vmem:[#allocation6] sm:$0xf]
    %v90 = vld [vmem:[#allocation6 + $0x4] sm:$0xf]
    %v91 = vld [vmem:[#allocation6 + $0x8] sm:$0xf]
    %v92 = vld [vmem:[#allocation6 + $0xc] sm:$0xf]
    %v93 = vld [vmem:[#allocation6 + $0x10] sm:$0xf]
    %v94 = vld [vmem:[#allocation6 + $0x14] sm:$0xf]
    %v95 = vld [vmem:[#allocation6 + $0x18] sm:$0xf]
    %v96 = vld [vmem:[#allocation6 + $0x1c] sm:$0xf]
    %v97 = vld [vmem:[#allocation6 + $0x20] sm:$0xf]
    %v98 = vld [vmem:[#allocation6 + $0x24] sm:$0xf]
    %v99 = vld [vmem:[#allocation6 + $0x28] sm:$0xf]
    %v100 = vld [vmem:[#allocation6 + $0x2c] sm:$0xf]
    %v101 = vld [vmem:[#allocation6 + $0x30] sm:$0xf]
    %v102 = vld [vmem:[#allocation6 + $0x34] sm:$0xf]
    %v103 = vld [vmem:[#allocation6 + $0x38] sm:$0xf]
    %v104 = vld [vmem:[#allocation6 + $0x3c] sm:$0xf]
    %v105 = vld [vmem:[#allocation6 + $0x40] sm:$0xf]
    %v106 = vld [vmem:[#allocation6 + $0x44] sm:$0xf]
    %v107 = vld [vmem:[#allocation6 + $0x48] sm:$0xf]
    %v108 = vld [vmem:[#allocation6 + $0x4c] sm:$0xf]
    %v109 = vld [vmem:[#allocation6 + $0x50] sm:$0xf]
    %v110 = vld [vmem:[#allocation6 + $0x54] sm:$0xf]
    %v111 = vld [vmem:[#allocation6 + $0x58] sm:$0xf]
    %v112 = vld [vmem:[#allocation6 + $0x5c] sm:$0xf]
    %v113 = vld [vmem:[#allocation6 + $0x60] sm:$0xf]
    %v114 = vld [vmem:[#allocation6 + $0x64] sm:$0xf]
    %v115 = vld [vmem:[#allocation6 + $0x68] sm:$0xf]
    %v116 = vld [vmem:[#allocation6 + $0x6c] sm:$0xf]
    %v117 = vld [vmem:[#allocation6 + $0x70] sm:$0xf]
    %v118 = vld [vmem:[#allocation6 + $0x74] sm:$0xf]
    %v119 = vld [vmem:[#allocation6 + $0x78] sm:$0xf]
    %v120 = vld [vmem:[#allocation6 + $0x7c] sm:$0xf]
    %v121 = vld [vmem:[#allocation6 + $0x80] sm:$0xf]
    %v122 = vld [vmem:[#allocation6 + $0x84] sm:$0xf]
    %v123 = vld [vmem:[#allocation6 + $0x88] sm:$0xf]
    %v124 = vld [vmem:[#allocation6 + $0x8c] sm:$0xf]
    %v125 = vld [vmem:[#allocation6 + $0x90] sm:$0xf]
    %v126 = vld [vmem:[#allocation6 + $0x94] sm:$0xf]
    %v127 = vld [vmem:[#allocation6 + $0x98] sm:$0xf]
    %v128 = vld [vmem:[#allocation6 + $0x9c] sm:$0xf]
    %v129 = vld [vmem:[#allocation6 + $0xa0] sm:$0xf]
    %v130 = vld [vmem:[#allocation6 + $0xa4] sm:$0xf]
    %v131 = vld [vmem:[#allocation6 + $0xa8] sm:$0xf]
    %v132 = vld [vmem:[#allocation6 + $0xac] sm:$0xf]
    %v133 = vld [vmem:[#allocation6 + $0xb0] sm:$0xf]
    %v134 = vld [vmem:[#allocation6 + $0xb4] sm:$0xf]
    %v135 = vld [vmem:[#allocation6 + $0xb8] sm:$0xf]
    %v136 = vld [vmem:[#allocation6 + $0xbc] sm:$0xf]
    %v137 = vld [vmem:[#allocation6 + $0xc0] sm:$0xf]
    %v138 = vld [vmem:[#allocation6 + $0xc4] sm:$0xf]
    %v139 = vld [vmem:[#allocation6 + $0xc8] sm:$0xf]
    %v140 = vld [vmem:[#allocation6 + $0xcc] sm:$0xf]
    %v141 = vld [vmem:[#allocation6 + $0xd0] sm:$0xf]
    %v142 = vld [vmem:[#allocation6 + $0xd4] sm:$0xf]
    %v143 = vld [vmem:[#allocation6 + $0xd8] sm:$0xf]
    %v144 = vld [vmem:[#allocation6 + $0xdc] sm:$0xf]
    %v145 = vld [vmem:[#allocation6 + $0xe0] sm:$0xf]
    %v146 = vld [vmem:[#allocation6 + $0xe4] sm:$0xf]
    %v147 = vld [vmem:[#allocation6 + $0xe8] sm:$0xf]
    %v148 = vld [vmem:[#allocation6 + $0xec] sm:$0xf]
    %v149 = vld [vmem:[#allocation6 + $0xf0] sm:$0xf]
    %v150 = vld [vmem:[#allocation6 + $0xf4] sm:$0xf]
    %v151 = vld [vmem:[#allocation6 + $0xf8] sm:$0xf]
    %v152 = vld [vmem:[#allocation6 + $0xfc] sm:$0xf]
    %v153 = vld [vmem:[#allocation6 + $0x100] sm:$0xf]
    %v154 = vld [vmem:[#allocation6 + $0x104] sm:$0xf]
    %v155 = vld [vmem:[#allocation6 + $0x108] sm:$0xf]
    %v156 = vld [vmem:[#allocation6 + $0x10c] sm:$0xf]
    %v157 = vld [vmem:[#allocation6 + $0x110] sm:$0xf]
    %v158 = vld [vmem:[#allocation6 + $0x114] sm:$0xf]
    %v159 = vld [vmem:[#allocation6 + $0x118] sm:$0xf]
    %v160 = vld [vmem:[#allocation6 + $0x11c] sm:$0xf]
    %v161 = vld [vmem:[#allocation6 + $0x120] sm:$0xf]
    %v162 = vld [vmem:[#allocation6 + $0x124] sm:$0xf]
    %v163 = vld [vmem:[#allocation6 + $0x128] sm:$0xf]
    %v164 = vld [vmem:[#allocation6 + $0x12c] sm:$0xf]
    %v165 = vld [vmem:[#allocation6 + $0x130] sm:$0xf]
    %v166 = vld [vmem:[#allocation6 + $0x134] sm:$0xf]
    %v167 = vld [vmem:[#allocation6 + $0x138] sm:$0xf]
    %v168 = vld [vmem:[#allocation6 + $0x13c] sm:$0xf]
    %v169 = vld [vmem:[#allocation6 + $0x140] sm:$0xf]
    %v170 = vld [vmem:[#allocation6 + $0x144] sm:$0xf]
    %v171 = vld [vmem:[#allocation6 + $0x148] sm:$0xf]
    %v172 = vld [vmem:[#allocation6 + $0x14c] sm:$0xf]
    %v173 = vld [vmem:[#allocation6 + $0x150] sm:$0xf]
    %v174 = vld [vmem:[#allocation6 + $0x154] sm:$0xf]
    %v175 = vld [vmem:[#allocation6 + $0x158] sm:$0xf]
    %v176 = vld [vmem:[#allocation6 + $0x15c] sm:$0xf]
    %v177 = vld [vmem:[#allocation6 + $0x160] sm:$0xf]
    %v178 = vld [vmem:[#allocation6 + $0x164] sm:$0xf]
    %v179 = vld [vmem:[#allocation6 + $0x168] sm:$0xf]
    %v180 = vld [vmem:[#allocation6 + $0x16c] sm:$0xf]
    %v181 = vld [vmem:[#allocation6 + $0x170] sm:$0xf]
    %v182 = vld [vmem:[#allocation6 + $0x174] sm:$0xf]
    %v183 = vld [vmem:[#allocation6 + $0x178] sm:$0xf]
    %v184 = vld [vmem:[#allocation6 + $0x17c] sm:$0xf]
    %v188 = vunpack.c.l.b16 %v86
    %v189 = vunpack.c.h.b16 %v86
    %v190 = vunpack.c.l.b16 %v87
    %v191 = vunpack.c.h.b16 %v87
    %v192 = vunpack.c.l.b16 %v88
    %v193 = vunpack.c.h.b16 %v88
    %v194 = vpack.c.b16 %v188, %v188
    %v195 = vpack.c.b16 %v189, %v189
    %v196 = vpack.c.b16 %v190, %v190
    %v197 = vpack.c.b16 %v191, %v191
    %v198 = vpack.c.b16 %v192, %v192
    %v199 = vpack.c.b16 %v193, %v193
    %v302 = vunpack.c.l.b16 %v89
    %v303 = vunpack.c.l.b16 %v90
    %v304 = vunpack.c.l.b16 %v91
    %v305 = vunpack.c.l.b16 %v92
    %v306 = vunpack.c.l.b16 %v93
    %v307 = vunpack.c.l.b16 %v94
    %v308 = vunpack.c.l.b16 %v95
    %v309 = vunpack.c.l.b16 %v96
    %v310 = vunpack.c.l.b16 %v97
    %v311 = vunpack.c.l.b16 %v98
    %v312 = vunpack.c.l.b16 %v99
    %v313 = vunpack.c.l.b16 %v100
    %v314 = vunpack.c.l.b16 %v101
    %v315 = vunpack.c.l.b16 %v102
    %v316 = vunpack.c.l.b16 %v103
    %v317 = vunpack.c.l.b16 %v104
    %v318 = vunpack.c.l.b16 %v105
    %v319 = vunpack.c.l.b16 %v106
    %v320 = vunpack.c.l.b16 %v107
    %v321 = vunpack.c.l.b16 %v108
    %v322 = vunpack.c.l.b16 %v109
    %v323 = vunpack.c.l.b16 %v110
    %v324 = vunpack.c.l.b16 %v111
    %v325 = vunpack.c.l.b16 %v112
    %v326 = vunpack.c.l.b16 %v113
    %v327 = vunpack.c.l.b16 %v114
    %v328 = vunpack.c.l.b16 %v115
    %v329 = vunpack.c.l.b16 %v116
    %v330 = vunpack.c.l.b16 %v117
    %v331 = vunpack.c.l.b16 %v118
    %v332 = vunpack.c.l.b16 %v119
    %v333 = vunpack.c.l.b16 %v120
    %v334 = vunpack.c.l.b16 %v121
    %v335 = vunpack.c.l.b16 %v122
    %v336 = vunpack.c.l.b16 %v123
    %v337 = vunpack.c.l.b16 %v124
    %v338 = vunpack.c.l.b16 %v125
    %v339 = vunpack.c.l.b16 %v126
    %v340 = vunpack.c.l.b16 %v127
    %v341 = vunpack.c.l.b16 %v128
    %v342 = vunpack.c.l.b16 %v129
    %v343 = vunpack.c.l.b16 %v130
    %v344 = vunpack.c.l.b16 %v131
    %v345 = vunpack.c.l.b16 %v132
    %v346 = vunpack.c.l.b16 %v133
    %v347 = vunpack.c.l.b16 %v134
    %v348 = vunpack.c.l.b16 %v135
    %v349 = vunpack.c.l.b16 %v136
    %v350 = vunpack.c.l.b16 %v137
    %v351 = vunpack.c.l.b16 %v138
    %v352 = vunpack.c.l.b16 %v139
    %v353 = vunpack.c.l.b16 %v140
    %v354 = vunpack.c.l.b16 %v141
    %v355 = vunpack.c.l.b16 %v142
    %v356 = vunpack.c.l.b16 %v143
    %v357 = vunpack.c.l.b16 %v144
    %v358 = vunpack.c.l.b16 %v145
    %v359 = vunpack.c.l.b16 %v146
    %v360 = vunpack.c.l.b16 %v147
    %v361 = vunpack.c.l.b16 %v148
    %v362 = vunpack.c.l.b16 %v149
    %v363 = vunpack.c.l.b16 %v150
    %v364 = vunpack.c.l.b16 %v151
    %v365 = vunpack.c.l.b16 %v152
    %v366 = vunpack.c.l.b16 %v153
    %v367 = vunpack.c.l.b16 %v154
    %v368 = vunpack.c.l.b16 %v155
    %v369 = vunpack.c.l.b16 %v156
    %v370 = vunpack.c.l.b16 %v157
    %v371 = vunpack.c.l.b16 %v158
    %v372 = vunpack.c.l.b16 %v159
    %v373 = vunpack.c.l.b16 %v160
    %v374 = vunpack.c.l.b16 %v161
    %v375 = vunpack.c.l.b16 %v162
    %v376 = vunpack.c.l.b16 %v163
    %v377 = vunpack.c.l.b16 %v164
    %v378 = vunpack.c.l.b16 %v165
    %v379 = vunpack.c.l.b16 %v166
    %v380 = vunpack.c.l.b16 %v167
    %v381 = vunpack.c.l.b16 %v168
    %v382 = vunpack.c.l.b16 %v169
    %v383 = vunpack.c.l.b16 %v170
    %v384 = vunpack.c.l.b16 %v171
    %v385 = vunpack.c.l.b16 %v172
    %v386 = vunpack.c.l.b16 %v173
    %v387 = vunpack.c.l.b16 %v174
    %v388 = vunpack.c.l.b16 %v175
    %v389 = vunpack.c.l.b16 %v176
    %v390 = vunpack.c.l.b16 %v177
    %v391 = vunpack.c.l.b16 %v178
    %v392 = vunpack.c.l.b16 %v179
    %v393 = vunpack.c.l.b16 %v180
    %v394 = vunpack.c.l.b16 %v181
    %v395 = vunpack.c.l.b16 %v182
    %v396 = vunpack.c.l.b16 %v183
    %v397 = vunpack.c.l.b16 %v184
    %v398 = vpack.c.b16 %v303, %v302
    %v399 = vpack.c.b16 %v305, %v304
    %v400 = vpack.c.b16 %v307, %v306
    %v401 = vpack.c.b16 %v309, %v308
    %v402 = vpack.c.b16 %v311, %v310
    %v403 = vpack.c.b16 %v313, %v312
    %v404 = vpack.c.b16 %v315, %v314
    %v405 = vpack.c.b16 %v317, %v316
    %v406 = vpack.c.b16 %v319, %v318
    %v407 = vpack.c.b16 %v321, %v320
    %v408 = vpack.c.b16 %v323, %v322
    %v409 = vpack.c.b16 %v325, %v324
    %v410 = vpack.c.b16 %v327, %v326
    %v411 = vpack.c.b16 %v329, %v328
    %v412 = vpack.c.b16 %v331, %v330
    %v413 = vpack.c.b16 %v333, %v332
    %v414 = vpack.c.b16 %v335, %v334
    %v415 = vpack.c.b16 %v337, %v336
    %v416 = vpack.c.b16 %v339, %v338
    %v417 = vpack.c.b16 %v341, %v340
    %v418 = vpack.c.b16 %v343, %v342
    %v419 = vpack.c.b16 %v345, %v344
    %v420 = vpack.c.b16 %v347, %v346
    %v421 = vpack.c.b16 %v349, %v348
    %v422 = vpack.c.b16 %v351, %v350
    %v423 = vpack.c.b16 %v353, %v352
    %v424 = vpack.c.b16 %v355, %v354
    %v425 = vpack.c.b16 %v357, %v356
    %v426 = vpack.c.b16 %v359, %v358
    %v427 = vpack.c.b16 %v361, %v360
    %v428 = vpack.c.b16 %v363, %v362
    %v429 = vpack.c.b16 %v365, %v364
    %v430 = vpack.c.b16 %v367, %v366
    %v431 = vpack.c.b16 %v369, %v368
    %v432 = vpack.c.b16 %v371, %v370
    %v433 = vpack.c.b16 %v373, %v372
    %v434 = vpack.c.b16 %v375, %v374
    %v435 = vpack.c.b16 %v377, %v376
    %v436 = vpack.c.b16 %v379, %v378
    %v437 = vpack.c.b16 %v381, %v380
    %v438 = vpack.c.b16 %v383, %v382
    %v439 = vpack.c.b16 %v385, %v384
    %v440 = vpack.c.b16 %v387, %v386
    %v441 = vpack.c.b16 %v389, %v388
    %v442 = vpack.c.b16 %v391, %v390
    %v443 = vpack.c.b16 %v393, %v392
    %v444 = vpack.c.b16 %v395, %v394
    %v445 = vpack.c.b16 %v397, %v396
    %494 = vmatpush.bf16.msra.mxu0 %v405
    %495 = vmatpush.bf16.msra.mxu0 %v404
    %496 = vmatpush.bf16.msra.mxu0 %v403
    %497 = vmatpush.bf16.msra.mxu0 %v402
    %498 = vmatpush.bf16.msra.mxu0 %v401
    %499 = vmatpush.bf16.msra.mxu0 %v400
    %500 = vmatpush.bf16.msra.mxu0 %v399
    %501 = vmatpush.bf16.msra.mxu0 %v398
    %502 = vmatmul.bf16.gmra.mxu0 %v194
    %v503 = vpop.f32.mrf.mxu0
    %v504 = vadd.f32 0.0, %v503
    %v505 = vpop.f32.mrf.mxu0
    %506 = vdwg.mxu0
    %507 = vmatpush.bf16.msra.mxu0 %v413
    %508 = vmatpush.bf16.msra.mxu0 %v412
    %509 = vmatpush.bf16.msra.mxu0 %v411
    %510 = vmatpush.bf16.msra.mxu0 %v410
    %511 = vmatpush.bf16.msra.mxu0 %v409
    %512 = vmatpush.bf16.msra.mxu0 %v408
    %513 = vmatpush.bf16.msra.mxu0 %v407
    %514 = vmatpush.bf16.msra.mxu0 %v406
    %515 = vmatmul.bf16.gmra.mxu0 %v195
    %v516 = vpop.f32.mrf.mxu0
    %v517 = vadd.f32 %v504, %v516
    %v518 = vpop.f32.mrf.mxu0
    %519 = vdwg.mxu0
    %520 = vmatpush.bf16.msra.mxu0 %v421
    %521 = vmatpush.bf16.msra.mxu0 %v420
    %522 = vmatpush.bf16.msra.mxu0 %v419
    %523 = vmatpush.bf16.msra.mxu0 %v418
    %524 = vmatpush.bf16.msra.mxu0 %v417
    %525 = vmatpush.bf16.msra.mxu0 %v416
    %526 = vmatpush.bf16.msra.mxu0 %v415
    %527 = vmatpush.bf16.msra.mxu0 %v414
    %528 = vmatmul.bf16.gmra.mxu0 %v196
    %v529 = vpop.f32.mrf.mxu0
    %v530 = vadd.f32 %v517, %v529
    %v531 = vpop.f32.mrf.mxu0
    %532 = vdwg.mxu0
    %533 = vmatpush.bf16.msra.mxu0 %v429
    %534 = vmatpush.bf16.msra.mxu0 %v428
    %535 = vmatpush.bf16.msra.mxu0 %v427
    %536 = vmatpush.bf16.msra.mxu0 %v426
    %537 = vmatpush.bf16.msra.mxu0 %v425
    %538 = vmatpush.bf16.msra.mxu0 %v424
    %539 = vmatpush.bf16.msra.mxu0 %v423
    %540 = vmatpush.bf16.msra.mxu0 %v422
    %541 = vmatmul.bf16.gmra.mxu0 %v197
    %v542 = vpop.f32.mrf.mxu0
    %v543 = vadd.f32 %v530, %v542
    %v544 = vpop.f32.mrf.mxu0
    %545 = vdwg.mxu0
    %546 = vmatpush.bf16.msra.mxu0 %v437
    %547 = vmatpush.bf16.msra.mxu0 %v436
    %548 = vmatpush.bf16.msra.mxu0 %v435
    %549 = vmatpush.bf16.msra.mxu0 %v434
    %550 = vmatpush.bf16.msra.mxu0 %v433
    %551 = vmatpush.bf16.msra.mxu0 %v432
    %552 = vmatpush.bf16.msra.mxu0 %v431
    %553 = vmatpush.bf16.msra.mxu0 %v430
    %554 = vmatmul.bf16.gmra.mxu0 %v198
    %v555 = vpop.f32.mrf.mxu0
    %v556 = vadd.f32 %v543, %v555
    %v557 = vpop.f32.mrf.mxu0
    %558 = vdwg.mxu0
    %559 = vmatpush.bf16.msra.mxu0 %v445
    %560 = vmatpush.bf16.msra.mxu0 %v444
    %561 = vmatpush.bf16.msra.mxu0 %v443
    %562 = vmatpush.bf16.msra.mxu0 %v442
    %563 = vmatpush.bf16.msra.mxu0 %v441
    %564 = vmatpush.bf16.msra.mxu0 %v440
    %565 = vmatpush.bf16.msra.mxu0 %v439
    %566 = vmatpush.bf16.msra.mxu0 %v438
    %567 = vmatmul.bf16.gmra.mxu0 %v199
    %v568 = vpop.f32.mrf.mxu0
    %v569 = vadd.f32 %v556, %v568
    %v570 = vpop.f32.mrf.mxu0
    %571 = vdwg.mxu0
    %v572 = vadd.f32 %v85, %v569
    %573 = vst [vmem:[#allocation2] sm:$0xff] %v572
    // Predicated region
    $region42: #{tpu_custom_call.1} parent=1 // pred_check
      %p574 = pneg %p80
    $region43: #{tpu_custom_call.1} parent=1 // pred_check_branch
      %576 = sbr.rel (%p574) target = $region45
    $region44: #{tpu_custom_call.1} parent=1 // pred_region
      %v577 = vld [vmem:[#allocation8] sm:$0x1]
      %v578 = vld [vmem:[#allocation8 + $0x1] sm:$0x1]
      %v579 = vld [vmem:[#allocation8 + $0x2] sm:$0x1]
      %v580 = vld [vmem:[#allocation2] sm:$0xff]
      %v581 = vperm.slane %v577, 0
      %v582 = vadd.f32 %v580, %v581
      %v583 = vmax.f32 %v582, 0.0
      %584 = vadd.xlane.f32.xlu0 %v583
      %v585 = vpop.xlane.xlu0 %584
      %v586 = vmul.f32 %v585, 0.015625
      %v587 = vsub.f32 %v583, %v586
      %v588 = vlaneseq
      %v589 = vand.u32 %v588, 127
      %vm590 = vcmp.lt.s32.totalorder %v589, 64
      %v591 = vsel %vm590, %v587, 0.0
      %v592 = vmul.f32 %v591, %v591
      %593 = vadd.xlane.f32.xlu0 %v592
      %v594 = vpop.xlane.xlu0 %593
      %v595 = vmul.f32 %v594, 0.015625
      %v596 = vadd.f32 %v595, 1e-05
      %v597 = vrsqrt.pop %v596
      %v598 = vmul.f32 %v597, %v596
      %v599 = vmul.f32 %v598, %v597
      %v600 = vmul.f32 0.5, %v599
      %v601 = vsub.f32 1.5, %v600
      %v602 = vmul.f32 %v597, %v601
      %vm603 = vweird.f32 %v596
      %vm604 = vweird.f32 %v597
      %vm605 = vmor %vm603, %vm604
      %v606 = vsel %vm605, %v597, %v602
      %v607 = vmul.f32 %v591, %v606
      %v608 = vperm.slane %v578, 0
      %v609 = vmul.f32 %v607, %v608
      %v610 = vperm.slane %v579, 0
      %v611 = vadd.f32 %v609, %v610
      %v612 = vpack.c.bf16 %v611, %v611
      %v613 = vld [vmem:[#allocation9] sm:$0xf]
      %v614 = vld [vmem:[#allocation9 + $0x4] sm:$0xf]
      %v615 = vld [vmem:[#allocation9 + $0x8] sm:$0xf]
      %v616 = vld [vmem:[#allocation9 + $0xc] sm:$0xf]
      %v617 = vld [vmem:[#allocation9 + $0x10] sm:$0xf]
      %v618 = vld [vmem:[#allocation9 + $0x14] sm:$0xf]
      %v619 = vld [vmem:[#allocation9 + $0x18] sm:$0xf]
      %v620 = vld [vmem:[#allocation9 + $0x1c] sm:$0xf]
      %v621 = vld [vmem:[#allocation9 + $0x20] sm:$0xf]
      %v622 = vld [vmem:[#allocation9 + $0x24] sm:$0xf]
      %v623 = vld [vmem:[#allocation9 + $0x28] sm:$0xf]
      %v624 = vld [vmem:[#allocation9 + $0x2c] sm:$0xf]
      %v625 = vld [vmem:[#allocation9 + $0x30] sm:$0xf]
      %v626 = vld [vmem:[#allocation9 + $0x34] sm:$0xf]
      %v627 = vld [vmem:[#allocation9 + $0x38] sm:$0xf]
      %v628 = vld [vmem:[#allocation9 + $0x3c] sm:$0xf]
      %v629 = vld [vmem:[%s4] sm:$0x1]
      %v631 = vperm.slane %v629, 0
      %v649 = vunpack.c.l.b16 %v613
      %v650 = vunpack.c.l.b16 %v614
      %v651 = vunpack.c.l.b16 %v615
      %v652 = vunpack.c.l.b16 %v616
      %v653 = vunpack.c.l.b16 %v617
      %v654 = vunpack.c.l.b16 %v618
      %v655 = vunpack.c.l.b16 %v619
      %v656 = vunpack.c.l.b16 %v620
      %v657 = vunpack.c.l.b16 %v621
      %v658 = vunpack.c.l.b16 %v622
      %v659 = vunpack.c.l.b16 %v623
      %v660 = vunpack.c.l.b16 %v624
      %v661 = vunpack.c.l.b16 %v625
      %v662 = vunpack.c.l.b16 %v626
      %v663 = vunpack.c.l.b16 %v627
      %v664 = vunpack.c.l.b16 %v628
      %v665 = vpack.c.b16 %v650, %v649
      %v666 = vpack.c.b16 %v652, %v651
      %v667 = vpack.c.b16 %v654, %v653
      %v668 = vpack.c.b16 %v656, %v655
      %v669 = vpack.c.b16 %v658, %v657
      %v670 = vpack.c.b16 %v660, %v659
      %v671 = vpack.c.b16 %v662, %v661
      %v672 = vpack.c.b16 %v664, %v663
      %681 = vmatpush.bf16.msra.mxu0 %v672
      %682 = vmatpush.bf16.msra.mxu0 %v671
      %683 = vmatpush.bf16.msra.mxu0 %v670
      %684 = vmatpush.bf16.msra.mxu0 %v669
      %685 = vmatpush.bf16.msra.mxu0 %v668
      %686 = vmatpush.bf16.msra.mxu0 %v667
      %687 = vmatpush.bf16.msra.mxu0 %v666
      %688 = vmatpush.bf16.msra.mxu0 %v665
      %689 = vmatmul.bf16.gmra.mxu0 %v612
      %v690 = vpop.f32.mrf.mxu0
      %v691 = vadd.f32 %v631, %v690
      %v692 = vpop.f32.mrf.mxu0
      %693 = vdwg.mxu0
      %694 = vst [vmem:[#allocation11] sm:$0xff] %v691
    $region45: #{tpu_custom_call.1} parent=1 // pred_fallthru
      _
    // Predicated region
    $region46: #{tpu_custom_call.1} parent=1 // pred_check
      _
    $region47: #{tpu_custom_call.1} parent=1 // pred_check_branch
      %696 = sbr.rel (0) target = $region49
    $region48: #{tpu_custom_call.1} parent=1 // pred_region
      %698 = vsyncadd [#allocation5], 0
      %s700 = sshll.u32 [#allocation11], 4
      %s701 = int_to_ptr.vmem [resolvable:$true] %s700
      %s702 = sshll.u32 %s5, 4
      %s703 = int_to_ptr.hbm [resolvable:$true] %s702
      %705 = dma.vmem_to_hbm [thread:$0]  %s701, 128, %s703, [#allocation5]
    $region49: #{tpu_custom_call.1} parent=1 // pred_fallthru
      _
    // Predicated region
    $region50: #{tpu_custom_call.1} parent=1 // pred_check
      _
    $region51: #{tpu_custom_call.1} parent=1 // pred_check_branch
      %707 = sbr.rel (0) target = $region53
    $region52: #{tpu_custom_call.1} parent=1 // pred_region
      %709 = dma.done [#allocation5], 128
    $region53: #{tpu_custom_call.1} parent=1 // pred_fallthru
      _
    %710 = vsyncpa [#allocation4], 1
    %711 = vsyncpa [#allocation7], 1
    %712 = vsyncpa [#allocation10], 1
    %713 = vsyncpa [#allocation5], 1

// kernel: tpu_custom_call.1
$region0: #{tpu_custom_call.1}
  #allocation0 [shape = 'u32[]', space=smem, size = 0x4, offset = 0x4, fixed_abs, tag = 'smem constant byte address 0x4 - core index']
  #allocation1 [shape = 'u32[72,128]{1,0:T(1,128)}', space=vmem, size = 0x9000, scoped, tag = 'internal scratch']
  #allocation2 [shape = 'f32[8,128]{1,0:T(8,128)}', space=vmem, size = 0x1000, scoped, tag = 'scratch operand']
  %s0 = inlined_call_operand.hbm [shape: bf16[8,768], index: 0, kind: input, shape index: {}]
  %s1 = inlined_call_operand.hbm [shape: bf16[768,128], index: 1, kind: input, shape index: {}]
  %s2 = inlined_call_operand.hbm [shape: f32[8,128], index: 2, kind: input, shape index: {}]
  %s3 = inlined_call_operand.hbm [shape: bf16[128,128], index: 3, kind: input, shape index: {}]
  %s4 = inlined_call_operand.vmem [shape: f32[1,128], index: 4, kind: input, shape index: {}]
  %s5 = inlined_call_operand.hbm [shape: f32[8,128], index: 5, kind: output, shape index: {}]
  %s6 = sld [smem:[#allocation0]]
  $region54: #{tpu_custom_call.1} parent=0
    _
  %s8 = ssub.s32 1, %s6
  %s9 = scalar_select 0, %s8, %s6
  $region1: #{tpu_custom_call.1} parent=0
    #allocation3 [shape = 'u8[12288]{0}', space=vmem, size = 0x3000, scoped, tag = 'input window, operand 0, single buffered']
    #allocation4 [shape = 's32[1]{0}', space=sflag, size = 0x4, scoped, tag = 'scoped memory for tpu_custom_call.1']
    #allocation5 [shape = 's32[1]{0}', space=sflag, size = 0x4, scoped, tag = 'scoped memory for tpu_custom_call.1']
    #allocation6 [shape = 'u8[196608]{0}', space=vmem, size = 0x30000, scoped, tag = 'input window, operand 1, single buffered']
    #allocation7 [shape = 's32[1]{0}', space=sflag, size = 0x4, scoped, tag = 'scoped memory for tpu_custom_call.1']
    #allocation8 [shape = 'u8[4096]{0}', space=vmem, size = 0x1000, scoped, tag = 'input window, operand 2, single buffered']
    #allocation9 [shape = 'u8[32768]{0}', space=vmem, size = 0x8000, scoped, tag = 'input window, operand 3, single buffered']
    #allocation10 [shape = 's32[1]{0}', space=sflag, size = 0x4, scoped, tag = 'scoped memory for tpu_custom_call.1']
    #allocation11 [shape = 'u8[4096]{0}', space=vmem, size = 0x1000, scoped, tag = 'output window, operand 0, single buffered']
    %10 = vsyncpa [#allocation4], 0
    %11 = vsyncpa [#allocation7], 0
    %12 = vsyncpa [#allocation10], 0
    %13 = vsyncpa [#allocation5], 0
    // Predicated region
    $region2: #{tpu_custom_call.1} parent=1 // pred_check
      _
    $region3: #{tpu_custom_call.1} parent=1 // pred_check_branch
      %15 = sbr.rel (0) target = $region5
    $region4: #{tpu_custom_call.1} parent=1 // pred_region
      %17 = vsyncadd [#allocation4], 0
      %s19 = sshll.u32 %s0, 4
      %s20 = int_to_ptr.hbm [resolvable:$true] %s19
      %s21 = sshll.u32 [#allocation3], 4
      %s22 = int_to_ptr.vmem [resolvable:$true] %s21
      %24 = dma.hbm_to_vmem [thread:$0]  %s20, 384, %s22, [#allocation4]
    $region5: #{tpu_custom_call.1} parent=1 // pred_fallthru
      _
    // Predicated region
    $region6: #{tpu_custom_call.1} parent=1 // pred_check
      _
    $region7: #{tpu_custom_call.1} parent=1 // pred_check_branch
      %26 = sbr.rel (0) target = $region9
    $region8: #{tpu_custom_call.1} parent=1 // pred_region
      %28 = vsyncadd [#allocation7], 0
      %s29 = sshll.u32 %s1, 4
      %s30 = int_to_ptr.hbm [resolvable:$true] %s29
      %s31 = sshll.u32 [#allocation6], 4
      %s32 = int_to_ptr.vmem [resolvable:$true] %s31
      %37 = dma.hbm_to_vmem [thread:$0]  %s30, 6144, %s32, [#allocation7], 64, 64, 4
    $region9: #{tpu_custom_call.1} parent=1 // pred_fallthru
      _
    // Predicated region
    $region10: #{tpu_custom_call.1} parent=1 // pred_check
      _
    $region11: #{tpu_custom_call.1} parent=1 // pred_check_branch
      %39 = sbr.rel (0) target = $region13
    $region12: #{tpu_custom_call.1} parent=1 // pred_region
      %41 = vsyncadd [#allocation7], 0
      %s43 = sshll.u32 %s2, 4
      %s44 = int_to_ptr.hbm [resolvable:$true] %s43
      %s45 = sshll.u32 [#allocation8], 4
      %s46 = int_to_ptr.vmem [resolvable:$true] %s45
      %48 = dma.hbm_to_vmem [thread:$0]  %s44, 128, %s46, [#allocation7]
    $region13: #{tpu_custom_call.1} parent=1 // pred_fallthru
      _
    // Predicated region
    $region14: #{tpu_custom_call.1} parent=1 // pred_check
      _
    $region15: #{tpu_custom_call.1} parent=1 // pred_check_branch
      %50 = sbr.rel (0) target = $region17
    $region16: #{tpu_custom_call.1} parent=1 // pred_region
      %52 = vsyncadd [#allocation10], 0
      %s53 = sshll.u32 %s3, 4
      %s54 = int_to_ptr.hbm [resolvable:$true] %s53
      %s55 = sshll.u32 [#allocation9], 4
      %s56 = int_to_ptr.vmem [resolvable:$true] %s55
      %61 = dma.hbm_to_vmem [thread:$0]  %s54, 1024, %s56, [#allocation10], 64, 64, 4
    $region17: #{tpu_custom_call.1} parent=1 // pred_fallthru
      _
    // Predicated region
    $region18: #{tpu_custom_call.1} parent=1 // pred_check
      _
    $region19: #{tpu_custom_call.1} parent=1 // pred_check_branch
      %63 = sbr.rel (0) target = $region21
    $region20: #{tpu_custom_call.1} parent=1 // pred_region
      _
    $region21: #{tpu_custom_call.1} parent=1 // pred_fallthru
      _
    // Predicated region
    $region22: #{tpu_custom_call.1} parent=1 // pred_check
      _
    $region23: #{tpu_custom_call.1} parent=1 // pred_check_branch
      %65 = sbr.rel (0) target = $region25
    $region24: #{tpu_custom_call.1} parent=1 // pred_region
      %67 = dma.done [#allocation4], 384
    $region25: #{tpu_custom_call.1} parent=1 // pred_fallthru
      _
    // Predicated region
    $region26: #{tpu_custom_call.1} parent=1 // pred_check
      _
    $region27: #{tpu_custom_call.1} parent=1 // pred_check_branch
      %69 = sbr.rel (0) target = $region29
    $region28: #{tpu_custom_call.1} parent=1 // pred_region
      %71 = dma.done [#allocation7], 6144
    $region29: #{tpu_custom_call.1} parent=1 // pred_fallthru
      _
    // Predicated region
    $region30: #{tpu_custom_call.1} parent=1 // pred_check
      _
    $region31: #{tpu_custom_call.1} parent=1 // pred_check_branch
      %73 = sbr.rel (0) target = $region33
    $region32: #{tpu_custom_call.1} parent=1 // pred_region
      %75 = dma.done [#allocation7], 128
    $region33: #{tpu_custom_call.1} parent=1 // pred_fallthru
      _
    // Predicated region
    $region34: #{tpu_custom_call.1} parent=1 // pred_check
      _
    $region35: #{tpu_custom_call.1} parent=1 // pred_check_branch
      %77 = sbr.rel (0) target = $region37
    $region36: #{tpu_custom_call.1} parent=1 // pred_region
      %79 = dma.done [#allocation10], 1024
    $region37: #{tpu_custom_call.1} parent=1 // pred_fallthru
      _
    %p80 = scmp.eq.s32.totalorder 0, 0
    // Predicated region
    $region38: #{tpu_custom_call.1} parent=1 // pred_check
      %p81 = pneg %p80
    $region39: #{tpu_custom_call.1} parent=1 // pred_check_branch
      %83 = sbr.rel (%p81) target = $region41
    $region40: #{tpu_custom_call.1} parent=1 // pred_region
      %84 = vst [vmem:[#allocation2] sm:$0xff] 0.0
    $region41: #{tpu_custom_call.1} parent=1 // pred_fallthru
      _
    %v85 = vld [vmem:[#allocation2] sm:$0xff]
    %v86 = vld [vmem:[#allocation3] sm:$0xff]
    %v87 = vld [vmem:[#allocation3 + $0x8] sm:$0xff]
    %v88 = vld [vmem:[#allocation3 + $0x10] sm:$0xff]
    %v89 = vld [vmem:[#allocation6] sm:$0xf]
    %v90 = vld [vmem:[#allocation6 + $0x4] sm:$0xf]
    %v91 = vld [vmem:[#allocation6 + $0x8] sm:$0xf]
    %v92 = vld [vmem:[#allocation6 + $0xc] sm:$0xf]
    %v93 = vld [vmem:[#allocation6 + $0x10] sm:$0xf]
    %v94 = vld [vmem:[#allocation6 + $0x14] sm:$0xf]
    %v95 = vld [vmem:[#allocation6 + $0x18] sm:$0xf]
    %v96 = vld [vmem:[#allocation6 + $0x1c] sm:$0xf]
    %v97 = vld [vmem:[#allocation6 + $0x20] sm:$0xf]
    %v98 = vld [vmem:[#allocation6 + $0x24] sm:$0xf]
    %v99 = vld [vmem:[#allocation6 + $0x28] sm:$0xf]
    %v100 = vld [vmem:[#allocation6 + $0x2c] sm:$0xf]
    %v101 = vld [vmem:[#allocation6 + $0x30] sm:$0xf]
    %v102 = vld [vmem:[#allocation6 + $0x34] sm:$0xf]
    %v103 = vld [vmem:[#allocation6 + $0x38] sm:$0xf]
    %v104 = vld [vmem:[#allocation6 + $0x3c] sm:$0xf]
    %v105 = vld [vmem:[#allocation6 + $0x40] sm:$0xf]
    %v106 = vld [vmem:[#allocation6 + $0x44] sm:$0xf]
    %v107 = vld [vmem:[#allocation6 + $0x48] sm:$0xf]
    %v108 = vld [vmem:[#allocation6 + $0x4c] sm:$0xf]
    %v109 = vld [vmem:[#allocation6 + $0x50] sm:$0xf]
    %v110 = vld [vmem:[#allocation6 + $0x54] sm:$0xf]
    %v111 = vld [vmem:[#allocation6 + $0x58] sm:$0xf]
    %v112 = vld [vmem:[#allocation6 + $0x5c] sm:$0xf]
    %v113 = vld [vmem:[#allocation6 + $0x60] sm:$0xf]
    %v114 = vld [vmem:[#allocation6 + $0x64] sm:$0xf]
    %v115 = vld [vmem:[#allocation6 + $0x68] sm:$0xf]
    %v116 = vld [vmem:[#allocation6 + $0x6c] sm:$0xf]
    %v117 = vld [vmem:[#allocation6 + $0x70] sm:$0xf]
    %v118 = vld [vmem:[#allocation6 + $0x74] sm:$0xf]
    %v119 = vld [vmem:[#allocation6 + $0x78] sm:$0xf]
    %v120 = vld [vmem:[#allocation6 + $0x7c] sm:$0xf]
    %v121 = vld [vmem:[#allocation6 + $0x80] sm:$0xf]
    %v122 = vld [vmem:[#allocation6 + $0x84] sm:$0xf]
    %v123 = vld [vmem:[#allocation6 + $0x88] sm:$0xf]
    %v124 = vld [vmem:[#allocation6 + $0x8c] sm:$0xf]
    %v125 = vld [vmem:[#allocation6 + $0x90] sm:$0xf]
    %v126 = vld [vmem:[#allocation6 + $0x94] sm:$0xf]
    %v127 = vld [vmem:[#allocation6 + $0x98] sm:$0xf]
    %v128 = vld [vmem:[#allocation6 + $0x9c] sm:$0xf]
    %v129 = vld [vmem:[#allocation6 + $0xa0] sm:$0xf]
    %v130 = vld [vmem:[#allocation6 + $0xa4] sm:$0xf]
    %v131 = vld [vmem:[#allocation6 + $0xa8] sm:$0xf]
    %v132 = vld [vmem:[#allocation6 + $0xac] sm:$0xf]
    %v133 = vld [vmem:[#allocation6 + $0xb0] sm:$0xf]
    %v134 = vld [vmem:[#allocation6 + $0xb4] sm:$0xf]
    %v135 = vld [vmem:[#allocation6 + $0xb8] sm:$0xf]
    %v136 = vld [vmem:[#allocation6 + $0xbc] sm:$0xf]
    %v137 = vld [vmem:[#allocation6 + $0xc0] sm:$0xf]
    %v138 = vld [vmem:[#allocation6 + $0xc4] sm:$0xf]
    %v139 = vld [vmem:[#allocation6 + $0xc8] sm:$0xf]
    %v140 = vld [vmem:[#allocation6 + $0xcc] sm:$0xf]
    %v141 = vld [vmem:[#allocation6 + $0xd0] sm:$0xf]
    %v142 = vld [vmem:[#allocation6 + $0xd4] sm:$0xf]
    %v143 = vld [vmem:[#allocation6 + $0xd8] sm:$0xf]
    %v144 = vld [vmem:[#allocation6 + $0xdc] sm:$0xf]
    %v145 = vld [vmem:[#allocation6 + $0xe0] sm:$0xf]
    %v146 = vld [vmem:[#allocation6 + $0xe4] sm:$0xf]
    %v147 = vld [vmem:[#allocation6 + $0xe8] sm:$0xf]
    %v148 = vld [vmem:[#allocation6 + $0xec] sm:$0xf]
    %v149 = vld [vmem:[#allocation6 + $0xf0] sm:$0xf]
    %v150 = vld [vmem:[#allocation6 + $0xf4] sm:$0xf]
    %v151 = vld [vmem:[#allocation6 + $0xf8] sm:$0xf]
    %v152 = vld [vmem:[#allocation6 + $0xfc] sm:$0xf]
    %v153 = vld [vmem:[#allocation6 + $0x100] sm:$0xf]
    %v154 = vld [vmem:[#allocation6 + $0x104] sm:$0xf]
    %v155 = vld [vmem:[#allocation6 + $0x108] sm:$0xf]
    %v156 = vld [vmem:[#allocation6 + $0x10c] sm:$0xf]
    %v157 = vld [vmem:[#allocation6 + $0x110] sm:$0xf]
    %v158 = vld [vmem:[#allocation6 + $0x114] sm:$0xf]
    %v159 = vld [vmem:[#allocation6 + $0x118] sm:$0xf]
    %v160 = vld [vmem:[#allocation6 + $0x11c] sm:$0xf]
    %v161 = vld [vmem:[#allocation6 + $0x120] sm:$0xf]
    %v162 = vld [vmem:[#allocation6 + $0x124] sm:$0xf]
    %v163 = vld [vmem:[#allocation6 + $0x128] sm:$0xf]
    %v164 = vld [vmem:[#allocation6 + $0x12c] sm:$0xf]
    %v165 = vld [vmem:[#allocation6 + $0x130] sm:$0xf]
    %v166 = vld [vmem:[#allocation6 + $0x134] sm:$0xf]
    %v167 = vld [vmem:[#allocation6 + $0x138] sm:$0xf]
    %v168 = vld [vmem:[#allocation6 + $0x13c] sm:$0xf]
    %v169 = vld [vmem:[#allocation6 + $0x140] sm:$0xf]
    %v170 = vld [vmem:[#allocation6 + $0x144] sm:$0xf]
    %v171 = vld [vmem:[#allocation6 + $0x148] sm:$0xf]
    %v172 = vld [vmem:[#allocation6 + $0x14c] sm:$0xf]
    %v173 = vld [vmem:[#allocation6 + $0x150] sm:$0xf]
    %v174 = vld [vmem:[#allocation6 + $0x154] sm:$0xf]
    %v175 = vld [vmem:[#allocation6 + $0x158] sm:$0xf]
    %v176 = vld [vmem:[#allocation6 + $0x15c] sm:$0xf]
    %v177 = vld [vmem:[#allocation6 + $0x160] sm:$0xf]
    %v178 = vld [vmem:[#allocation6 + $0x164] sm:$0xf]
    %v179 = vld [vmem:[#allocation6 + $0x168] sm:$0xf]
    %v180 = vld [vmem:[#allocation6 + $0x16c] sm:$0xf]
    %v181 = vld [vmem:[#allocation6 + $0x170] sm:$0xf]
    %v182 = vld [vmem:[#allocation6 + $0x174] sm:$0xf]
    %v183 = vld [vmem:[#allocation6 + $0x178] sm:$0xf]
    %v184 = vld [vmem:[#allocation6 + $0x17c] sm:$0xf]
    %v188 = vunpack.c.l.b16 %v86
    %v189 = vunpack.c.h.b16 %v86
    %v190 = vunpack.c.l.b16 %v87
    %v191 = vunpack.c.h.b16 %v87
    %v192 = vunpack.c.l.b16 %v88
    %v193 = vunpack.c.h.b16 %v88
    %v194 = vpack.c.b16 %v188, %v188
    %v195 = vpack.c.b16 %v189, %v189
    %v196 = vpack.c.b16 %v190, %v190
    %v197 = vpack.c.b16 %v191, %v191
    %v198 = vpack.c.b16 %v192, %v192
    %v199 = vpack.c.b16 %v193, %v193
    %v302 = vunpack.c.l.b16 %v89
    %v303 = vunpack.c.l.b16 %v90
    %v304 = vunpack.c.l.b16 %v91
    %v305 = vunpack.c.l.b16 %v92
    %v306 = vunpack.c.l.b16 %v93
    %v307 = vunpack.c.l.b16 %v94
    %v308 = vunpack.c.l.b16 %v95
    %v309 = vunpack.c.l.b16 %v96
    %v310 = vunpack.c.l.b16 %v97
    %v311 = vunpack.c.l.b16 %v98
    %v312 = vunpack.c.l.b16 %v99
    %v313 = vunpack.c.l.b16 %v100
    %v314 = vunpack.c.l.b16 %v101
    %v315 = vunpack.c.l.b16 %v102
    %v316 = vunpack.c.l.b16 %v103
    %v317 = vunpack.c.l.b16 %v104
    %v318 = vunpack.c.l.b16 %v105
    %v319 = vunpack.c.l.b16 %v106
    %v320 = vunpack.c.l.b16 %v107
    %v321 = vunpack.c.l.b16 %v108
    %v322 = vunpack.c.l.b16 %v109
    %v323 = vunpack.c.l.b16 %v110
    %v324 = vunpack.c.l.b16 %v111
    %v325 = vunpack.c.l.b16 %v112
    %v326 = vunpack.c.l.b16 %v113
    %v327 = vunpack.c.l.b16 %v114
    %v328 = vunpack.c.l.b16 %v115
    %v329 = vunpack.c.l.b16 %v116
    %v330 = vunpack.c.l.b16 %v117
    %v331 = vunpack.c.l.b16 %v118
    %v332 = vunpack.c.l.b16 %v119
    %v333 = vunpack.c.l.b16 %v120
    %v334 = vunpack.c.l.b16 %v121
    %v335 = vunpack.c.l.b16 %v122
    %v336 = vunpack.c.l.b16 %v123
    %v337 = vunpack.c.l.b16 %v124
    %v338 = vunpack.c.l.b16 %v125
    %v339 = vunpack.c.l.b16 %v126
    %v340 = vunpack.c.l.b16 %v127
    %v341 = vunpack.c.l.b16 %v128
    %v342 = vunpack.c.l.b16 %v129
    %v343 = vunpack.c.l.b16 %v130
    %v344 = vunpack.c.l.b16 %v131
    %v345 = vunpack.c.l.b16 %v132
    %v346 = vunpack.c.l.b16 %v133
    %v347 = vunpack.c.l.b16 %v134
    %v348 = vunpack.c.l.b16 %v135
    %v349 = vunpack.c.l.b16 %v136
    %v350 = vunpack.c.l.b16 %v137
    %v351 = vunpack.c.l.b16 %v138
    %v352 = vunpack.c.l.b16 %v139
    %v353 = vunpack.c.l.b16 %v140
    %v354 = vunpack.c.l.b16 %v141
    %v355 = vunpack.c.l.b16 %v142
    %v356 = vunpack.c.l.b16 %v143
    %v357 = vunpack.c.l.b16 %v144
    %v358 = vunpack.c.l.b16 %v145
    %v359 = vunpack.c.l.b16 %v146
    %v360 = vunpack.c.l.b16 %v147
    %v361 = vunpack.c.l.b16 %v148
    %v362 = vunpack.c.l.b16 %v149
    %v363 = vunpack.c.l.b16 %v150
    %v364 = vunpack.c.l.b16 %v151
    %v365 = vunpack.c.l.b16 %v152
    %v366 = vunpack.c.l.b16 %v153
    %v367 = vunpack.c.l.b16 %v154
    %v368 = vunpack.c.l.b16 %v155
    %v369 = vunpack.c.l.b16 %v156
    %v370 = vunpack.c.l.b16 %v157
    %v371 = vunpack.c.l.b16 %v158
    %v372 = vunpack.c.l.b16 %v159
    %v373 = vunpack.c.l.b16 %v160
    %v374 = vunpack.c.l.b16 %v161
    %v375 = vunpack.c.l.b16 %v162
    %v376 = vunpack.c.l.b16 %v163
    %v377 = vunpack.c.l.b16 %v164
    %v378 = vunpack.c.l.b16 %v165
    %v379 = vunpack.c.l.b16 %v166
    %v380 = vunpack.c.l.b16 %v167
    %v381 = vunpack.c.l.b16 %v168
    %v382 = vunpack.c.l.b16 %v169
    %v383 = vunpack.c.l.b16 %v170
    %v384 = vunpack.c.l.b16 %v171
    %v385 = vunpack.c.l.b16 %v172
    %v386 = vunpack.c.l.b16 %v173
    %v387 = vunpack.c.l.b16 %v174
    %v388 = vunpack.c.l.b16 %v175
    %v389 = vunpack.c.l.b16 %v176
    %v390 = vunpack.c.l.b16 %v177
    %v391 = vunpack.c.l.b16 %v178
    %v392 = vunpack.c.l.b16 %v179
    %v393 = vunpack.c.l.b16 %v180
    %v394 = vunpack.c.l.b16 %v181
    %v395 = vunpack.c.l.b16 %v182
    %v396 = vunpack.c.l.b16 %v183
    %v397 = vunpack.c.l.b16 %v184
    %v398 = vpack.c.b16 %v303, %v302
    %v399 = vpack.c.b16 %v305, %v304
    %v400 = vpack.c.b16 %v307, %v306
    %v401 = vpack.c.b16 %v309, %v308
    %v402 = vpack.c.b16 %v311, %v310
    %v403 = vpack.c.b16 %v313, %v312
    %v404 = vpack.c.b16 %v315, %v314
    %v405 = vpack.c.b16 %v317, %v316
    %v406 = vpack.c.b16 %v319, %v318
    %v407 = vpack.c.b16 %v321, %v320
    %v408 = vpack.c.b16 %v323, %v322
    %v409 = vpack.c.b16 %v325, %v324
    %v410 = vpack.c.b16 %v327, %v326
    %v411 = vpack.c.b16 %v329, %v328
    %v412 = vpack.c.b16 %v331, %v330
    %v413 = vpack.c.b16 %v333, %v332
    %v414 = vpack.c.b16 %v335, %v334
    %v415 = vpack.c.b16 %v337, %v336
    %v416 = vpack.c.b16 %v339, %v338
    %v417 = vpack.c.b16 %v341, %v340
    %v418 = vpack.c.b16 %v343, %v342
    %v419 = vpack.c.b16 %v345, %v344
    %v420 = vpack.c.b16 %v347, %v346
    %v421 = vpack.c.b16 %v349, %v348
    %v422 = vpack.c.b16 %v351, %v350
    %v423 = vpack.c.b16 %v353, %v352
    %v424 = vpack.c.b16 %v355, %v354
    %v425 = vpack.c.b16 %v357, %v356
    %v426 = vpack.c.b16 %v359, %v358
    %v427 = vpack.c.b16 %v361, %v360
    %v428 = vpack.c.b16 %v363, %v362
    %v429 = vpack.c.b16 %v365, %v364
    %v430 = vpack.c.b16 %v367, %v366
    %v431 = vpack.c.b16 %v369, %v368
    %v432 = vpack.c.b16 %v371, %v370
    %v433 = vpack.c.b16 %v373, %v372
    %v434 = vpack.c.b16 %v375, %v374
    %v435 = vpack.c.b16 %v377, %v376
    %v436 = vpack.c.b16 %v379, %v378
    %v437 = vpack.c.b16 %v381, %v380
    %v438 = vpack.c.b16 %v383, %v382
    %v439 = vpack.c.b16 %v385, %v384
    %v440 = vpack.c.b16 %v387, %v386
    %v441 = vpack.c.b16 %v389, %v388
    %v442 = vpack.c.b16 %v391, %v390
    %v443 = vpack.c.b16 %v393, %v392
    %v444 = vpack.c.b16 %v395, %v394
    %v445 = vpack.c.b16 %v397, %v396
    %494 = vmatpush.bf16.msra.mxu0 %v405
    %495 = vmatpush.bf16.msra.mxu0 %v404
    %496 = vmatpush.bf16.msra.mxu0 %v403
    %497 = vmatpush.bf16.msra.mxu0 %v402
    %498 = vmatpush.bf16.msra.mxu0 %v401
    %499 = vmatpush.bf16.msra.mxu0 %v400
    %500 = vmatpush.bf16.msra.mxu0 %v399
    %501 = vmatpush.bf16.msra.mxu0 %v398
    %502 = vmatmul.bf16.gmra.mxu0 %v194
    %v503 = vpop.f32.mrf.mxu0
    %v504 = vadd.f32 0.0, %v503
    %v505 = vpop.f32.mrf.mxu0
    %506 = vdwg.mxu0
    %507 = vmatpush.bf16.msra.mxu0 %v413
    %508 = vmatpush.bf16.msra.mxu0 %v412
    %509 = vmatpush.bf16.msra.mxu0 %v411
    %510 = vmatpush.bf16.msra.mxu0 %v410
    %511 = vmatpush.bf16.msra.mxu0 %v409
    %512 = vmatpush.bf16.msra.mxu0 %v408
    %513 = vmatpush.bf16.msra.mxu0 %v407
    %514 = vmatpush.bf16.msra.mxu0 %v406
    %515 = vmatmul.bf16.gmra.mxu0 %v195
    %v516 = vpop.f32.mrf.mxu0
    %v517 = vadd.f32 %v504, %v516
    %v518 = vpop.f32.mrf.mxu0
    %519 = vdwg.mxu0
    %520 = vmatpush.bf16.msra.mxu0 %v421
    %521 = vmatpush.bf16.msra.mxu0 %v420
    %522 = vmatpush.bf16.msra.mxu0 %v419
    %523 = vmatpush.bf16.msra.mxu0 %v418
    %524 = vmatpush.bf16.msra.mxu0 %v417
    %525 = vmatpush.bf16.msra.mxu0 %v416
    %526 = vmatpush.bf16.msra.mxu0 %v415
    %527 = vmatpush.bf16.msra.mxu0 %v414
    %528 = vmatmul.bf16.gmra.mxu0 %v196
    %v529 = vpop.f32.mrf.mxu0
    %v530 = vadd.f32 %v517, %v529
    %v531 = vpop.f32.mrf.mxu0
    %532 = vdwg.mxu0
    %533 = vmatpush.bf16.msra.mxu0 %v429
    %534 = vmatpush.bf16.msra.mxu0 %v428
    %535 = vmatpush.bf16.msra.mxu0 %v427
    %536 = vmatpush.bf16.msra.mxu0 %v426
    %537 = vmatpush.bf16.msra.mxu0 %v425
    %538 = vmatpush.bf16.msra.mxu0 %v424
    %539 = vmatpush.bf16.msra.mxu0 %v423
    %540 = vmatpush.bf16.msra.mxu0 %v422
    %541 = vmatmul.bf16.gmra.mxu0 %v197
    %v542 = vpop.f32.mrf.mxu0
    %v543 = vadd.f32 %v530, %v542
    %v544 = vpop.f32.mrf.mxu0
    %545 = vdwg.mxu0
    %546 = vmatpush.bf16.msra.mxu0 %v437
    %547 = vmatpush.bf16.msra.mxu0 %v436
    %548 = vmatpush.bf16.msra.mxu0 %v435
    %549 = vmatpush.bf16.msra.mxu0 %v434
    %550 = vmatpush.bf16.msra.mxu0 %v433
    %551 = vmatpush.bf16.msra.mxu0 %v432
    %552 = vmatpush.bf16.msra.mxu0 %v431
    %553 = vmatpush.bf16.msra.mxu0 %v430
    %554 = vmatmul.bf16.gmra.mxu0 %v198
    %v555 = vpop.f32.mrf.mxu0
    %v556 = vadd.f32 %v543, %v555
    %v557 = vpop.f32.mrf.mxu0
    %558 = vdwg.mxu0
    %559 = vmatpush.bf16.msra.mxu0 %v445
    %560 = vmatpush.bf16.msra.mxu0 %v444
    %561 = vmatpush.bf16.msra.mxu0 %v443
    %562 = vmatpush.bf16.msra.mxu0 %v442
    %563 = vmatpush.bf16.msra.mxu0 %v441
    %564 = vmatpush.bf16.msra.mxu0 %v440
    %565 = vmatpush.bf16.msra.mxu0 %v439
    %566 = vmatpush.bf16.msra.mxu0 %v438
    %567 = vmatmul.bf16.gmra.mxu0 %v199
    %v568 = vpop.f32.mrf.mxu0
    %v569 = vadd.f32 %v556, %v568
    %v570 = vpop.f32.mrf.mxu0
    %571 = vdwg.mxu0
    %v572 = vadd.f32 %v85, %v569
    %573 = vst [vmem:[#allocation2] sm:$0xff] %v572
    // Predicated region
    $region42: #{tpu_custom_call.1} parent=1 // pred_check
      %p574 = pneg %p80
    $region43: #{tpu_custom_call.1} parent=1 // pred_check_branch
      %576 = sbr.rel (%p574) target = $region45
    $region44: #{tpu_custom_call.1} parent=1 // pred_region
      %v577 = vld [vmem:[#allocation8] sm:$0x1]
      %v578 = vld [vmem:[#allocation8 + $0x1] sm:$0x1]
      %v579 = vld [vmem:[#allocation8 + $0x2] sm:$0x1]
      %v580 = vld [vmem:[#allocation2] sm:$0xff]
      %v581 = vperm.slane %v577, 0
      %v582 = vadd.f32 %v580, %v581
      %v583 = vmax.f32 %v582, 0.0
      %584 = vadd.xlane.f32.xlu0 %v583
      %v585 = vpop.xlane.xlu0 %584
      %v586 = vmul.f32 %v585, 0.015625
      %v587 = vsub.f32 %v583, %v586
      %v588 = vlaneseq
      %v589 = vand.u32 %v588, 127
      %vm590 = vcmp.lt.s32.totalorder %v589, 64
      %v591 = vsel %vm590, %v587, 0.0
      %v592 = vmul.f32 %v591, %v591
      %593 = vadd.xlane.f32.xlu0 %v592
      %v594 = vpop.xlane.xlu0 %593
      %v595 = vmul.f32 %v594, 0.015625
      %v596 = vadd.f32 %v595, 1e-05
      %v597 = vrsqrt.pop %v596
      %v598 = vmul.f32 %v597, %v596
      %v599 = vmul.f32 %v598, %v597
      %v600 = vmul.f32 0.5, %v599
      %v601 = vsub.f32 1.5, %v600
      %v602 = vmul.f32 %v597, %v601
      %vm603 = vweird.f32 %v596
      %vm604 = vweird.f32 %v597
      %vm605 = vmor %vm603, %vm604
      %v606 = vsel %vm605, %v597, %v602
      %v607 = vmul.f32 %v591, %v606
      %v608 = vperm.slane %v578, 0
      %v609 = vmul.f32 %v607, %v608
      %v610 = vperm.slane %v579, 0
      %v611 = vadd.f32 %v609, %v610
      %v612 = vpack.c.bf16 %v611, %v611
      %v613 = vld [vmem:[#allocation9] sm:$0xf]
      %v614 = vld [vmem:[#allocation9 + $0x4] sm:$0xf]
      %v615 = vld [vmem:[#allocation9 + $0x8] sm:$0xf]
      %v616 = vld [vmem:[#allocation9 + $0xc] sm:$0xf]
      %v617 = vld [vmem:[#allocation9 + $0x10] sm:$0xf]
      %v618 = vld [vmem:[#allocation9 + $0x14] sm:$0xf]
      %v619 = vld [vmem:[#allocation9 + $0x18] sm:$0xf]
      %v620 = vld [vmem:[#allocation9 + $0x1c] sm:$0xf]
      %v621 = vld [vmem:[#allocation9 + $0x20] sm:$0xf]
      %v622 = vld [vmem:[#allocation9 + $0x24] sm:$0xf]
      %v623 = vld [vmem:[#allocation9 + $0x28] sm:$0xf]
      %v624 = vld [vmem:[#allocation9 + $0x2c] sm:$0xf]
      %v625 = vld [vmem:[#allocation9 + $0x30] sm:$0xf]
      %v626 = vld [vmem:[#allocation9 + $0x34] sm:$0xf]
      %v627 = vld [vmem:[#allocation9 + $0x38] sm:$0xf]
      %v628 = vld [vmem:[#allocation9 + $0x3c] sm:$0xf]
      %v629 = vld [vmem:[%s4] sm:$0x1]
      %v631 = vperm.slane %v629, 0
      %v649 = vunpack.c.l.b16 %v613
      %v650 = vunpack.c.l.b16 %v614
      %v651 = vunpack.c.l.b16 %v615
      %v652 = vunpack.c.l.b16 %v616
      %v653 = vunpack.c.l.b16 %v617
      %v654 = vunpack.c.l.b16 %v618
      %v655 = vunpack.c.l.b16 %v619
      %v656 = vunpack.c.l.b16 %v620
      %v657 = vunpack.c.l.b16 %v621
      %v658 = vunpack.c.l.b16 %v622
      %v659 = vunpack.c.l.b16 %v623
      %v660 = vunpack.c.l.b16 %v624
      %v661 = vunpack.c.l.b16 %v625
      %v662 = vunpack.c.l.b16 %v626
      %v663 = vunpack.c.l.b16 %v627
      %v664 = vunpack.c.l.b16 %v628
      %v665 = vpack.c.b16 %v650, %v649
      %v666 = vpack.c.b16 %v652, %v651
      %v667 = vpack.c.b16 %v654, %v653
      %v668 = vpack.c.b16 %v656, %v655
      %v669 = vpack.c.b16 %v658, %v657
      %v670 = vpack.c.b16 %v660, %v659
      %v671 = vpack.c.b16 %v662, %v661
      %v672 = vpack.c.b16 %v664, %v663
      %681 = vmatpush.bf16.msra.mxu0 %v672
      %682 = vmatpush.bf16.msra.mxu0 %v671
      %683 = vmatpush.bf16.msra.mxu0 %v670
      %684 = vmatpush.bf16.msra.mxu0 %v669
      %685 = vmatpush.bf16.msra.mxu0 %v668
      %686 = vmatpush.bf16.msra.mxu0 %v667
      %687 = vmatpush.bf16.msra.mxu0 %v666
      %688 = vmatpush.bf16.msra.mxu0 %v665
      %689 = vmatmul.bf16.gmra.mxu0 %v612
      %v690 = vpop.f32.mrf.mxu0
      %v691 = vadd.f32 %v631, %v690
      %v692 = vpop.f32.mrf.mxu0
      %693 = vdwg.mxu0
      %694 = vst [vmem:[#allocation11] sm:$0xff] %v691
    $region45: #{tpu_custom_call.1} parent=1 // pred_fallthru
      _
    // Predicated region
    $region46: #{tpu_custom_call.1} parent=1 // pred_check
      _
    $region47: #{tpu_custom_call.1} parent=1 // pred_check_branch
      %696 = sbr.rel (0) target = $region49
    $region48: #{tpu_custom_call.1} parent=1 // pred_region
      %698 = vsyncadd [#allocation5], 0
      %s700 = sshll.u32 [#allocation11], 4
      %s701 = int_to_ptr.vmem [resolvable:$true] %s700
      %s702 = sshll.u32 %s5, 4
      %s703 = int_to_ptr.hbm [resolvable:$true] %s702
      %705 = dma.vmem_to_hbm [thread:$0]  %s701, 128, %s703, [#allocation5]
    $region49: #{tpu_custom_call.1} parent=1 // pred_fallthru
      _
    // Predicated region
    $region50: #{tpu_custom_call.1} parent=1 // pred_check
      _
    $region51: #{tpu_custom_call.1} parent=1 // pred_check_branch
      %707 = sbr.rel (0) target = $region53
    $region52: #{tpu_custom_call.1} parent=1 // pred_region
      %709 = dma.done [#allocation5], 128
    $region53: #{tpu_custom_call.1} parent=1 // pred_fallthru
      _
    %710 = vsyncpa [#allocation4], 1
    %711 = vsyncpa [#allocation7], 1
    %712 = vsyncpa [#allocation10], 1
    %713 = vsyncpa [#allocation5], 1

</llo_original>
